<compile_context>
chip_gen: v7x
topology: tpu7x:2x2x1
jax: 0.10.0
libtpu: 0.0.40
codegen_flags: <defaults>
</compile_context>

<pallas_src>
import numpy as np
import jax
import jax.numpy as jnp
from jax.experimental import pallas as pl
from jax.experimental.pallas import tpu as pltpu

EPS = 1e-5
NEG_SLOPE = 0.2

# Whole-array-in-VMEM spec (all operands here are tiny).
_VMEM = pl.BlockSpec(memory_space=pltpu.MemorySpace.VMEM)

# Flat conv2-tap order t <-> (i, j, dr, dc); the conv2 kernel tap is
# (kh, kw) = (2i + dr, 2j + dc), and at conv2 output (oh, ow) it reads the
# conv1 output h[2(oh+i)+dr-1, 2(ow+j)+dc-1] (zero where that is padding).
_TAPS = [(i, j, dr, dc)
         for i in range(2) for j in range(2) for dr in range(2) for dc in range(2)]


def _gather_index():
    """(64, 256) int32 index into the flattened 34x34 zero-padded input.

    Row g = oh*8 + ow (padded 8x8 conv2 output grid); column t*16 + kh'*4 + kw'
    holds the conv1-kernel element (kh', kw') of the conv1 input patch feeding
    conv2 tap t at that output position.  Positions that map to conv1/conv2
    zero padding point at flat index 0, which is a padding pixel (== 0.0).
    """
    idx = np.zeros((64, 256), np.int32)
    for r in range(8):
        for c in range(8):
            g = r * 8 + c
            for t, (i, j, dr, dc) in enumerate(_TAPS):
                hr = 2 * (r + i) + dr - 1          # conv1 output row for this tap
                hc = 2 * (c + j) + dc - 1
                if 0 <= hr < 14 and 0 <= hc < 14:  # else: conv2 padding -> stays 0
                    for kh in range(4):
                        for kw in range(4):
                            u = 2 * hr + kh + 2    # row in the 34x34 padded image
                            v = 2 * hc + kw + 2
                            idx[g, t * 16 + kh * 4 + kw] = u * 34 + v
    return idx


_GATHER_IDX = _gather_index()


def _valid_mask(B):
    """(B*64, 1) f32: 1 for the B*49 valid conv2 outputs, 0 for padded grid rows."""
    m = np.zeros((8, 8), np.float32)
    m[:7, :7] = 1.0
    return jnp.asarray(np.tile(m.reshape(1, 64), (B, 1)).reshape(B * 64, 1))


# ------------------------------ fused kernel --------------------------------

def _make_kernel(B):
    inv_n = 1.0 / float(B * 7 * 7)     # BN statistics over the valid rows only

    def kernel(p1_ref, w1_ref, w2_ref, g_ref, bt_ref, wl_ref, bl_ref, m_ref,
               o_ref):
        # ---- Conv1 for all 16 conv2 taps at once (block-diag weight) + LeakyReLU
        y1 = jnp.dot(p1_ref[...], w1_ref[...],
                     preferred_element_type=jnp.float32)            # (B*64, 1024)
        y1 = jnp.where(y1 > 0, y1, NEG_SLOPE * y1).astype(jnp.bfloat16)

        # ---- Conv2: y1 is already the tap-expanded im2col matrix ----
        y2 = jnp.dot(y1, w2_ref[...],
                     preferred_element_type=jnp.float32)            # (B*64, 128)

        # ---- BatchNorm2d (training-mode batch stats) + LeakyReLU ----
        mask = m_ref[...]                                           # (B*64, 1)
        mean = jnp.sum(y2 * mask, axis=0, keepdims=True) * inv_n
        diff = y2 - mean
        var = jnp.sum(diff * diff * mask, axis=0, keepdims=True) * inv_n
        scale = g_ref[...] * jax.lax.rsqrt(var + EPS)               # gamma folded in
        z = diff * scale + bt_ref[...]
        z = jnp.where(z > 0, z, NEG_SLOPE * z)                      # (B*64, 128)

        # ---- Flatten (C,H,W order folded into wl) + Linear(6272->1) + Sigmoid
        wl = wl_ref[...]                                            # (64, 128)
        parts = []
        for b in range(B):
            zb = z[b * 64:(b + 1) * 64, :]
            parts.append(jnp.sum(zb * wl, axis=0, keepdims=True))   # (1, 128)
        cs = jnp.concatenate(parts, axis=0)                         # (B, 128)
        logits = jnp.sum(cs, axis=1, keepdims=True) + bl_ref[...]   # (B, 1)
        o_ref[...] = jax.nn.sigmoid(logits)

    return kernel


# -------------------------------- parameters --------------------------------

def init_params(key):
    k1, k2, k3 = jax.random.split(key, 3)
    # PyTorch layouts: (Cout, Cin, kh, kw) and (out_features, in_features).
    w1_t = 0.02 * jax.random.normal(k1, (64, 1, 4, 4), jnp.float32)
    w2_t = 0.02 * jax.random.normal(k2, (128, 64, 4, 4), jnp.float32)
    wl_t = 0.02 * jax.random.normal(k3, (1, 128 * 7 * 7), jnp.float32)

    w1_np, w2_np, wl_np = np.asarray(w1_t), np.asarray(w2_t), np.asarray(wl_t)

    # conv1 as a (256, 1024) block-diagonal matrix: one (16, 64) copy of the
    # (kh,kw)-major conv1 weight per conv2 tap.  The zero MACs are free on the
    # otherwise-idle MXU and keep every kernel operand a full-width slab.
    w1_mat = w1_np.reshape(64, 16).T                                # (16, 64)
    w1_big = np.zeros((256, 1024), np.float32)
    for t in range(16):
        w1_big[t * 16:(t + 1) * 16, t * 64:(t + 1) * 64] = w1_mat

    # conv2 as (1024, 128): row block t holds w2[:, :, 2i+dr, 2j+dc].T.
    w2_big = np.concatenate(
        [w2_np[:, :, 2 * i + dr, 2 * j + dc].T for (i, j, dr, dc) in _TAPS],
        axis=0)

    # Head weight on the padded 8x8 grid; PyTorch's (C, H, W) flatten order is
    # folded in and the 15 invalid grid positions per sample get zero weight.
    wl = np.transpose(wl_np.reshape(128, 7, 7), (1, 2, 0))          # (7, 7, 128)
    wl = np.pad(wl, ((0, 1), (0, 1), (0, 0))).reshape(64, 128)

    return {
        "w1": jnp.asarray(w1_big, jnp.bfloat16),
        "w2": jnp.asarray(w2_big, jnp.bfloat16),
        "gamma": jnp.ones((1, 128), jnp.float32),    # BatchNorm2d default init
        "beta": jnp.zeros((1, 128), jnp.float32),
        "wl": jnp.asarray(wl, jnp.float32),
        "bl": jnp.zeros((1, 1), jnp.float32),        # Linear bias (init to 0)
        # torch-layout copies for the pure-JAX reference check
        "_w1_t": w1_t, "_w2_t": w2_t, "_wl_t": wl_t,
    }


# --------------------------------- forward ----------------------------------

@jax.jit
def discriminator_forward(x_nchw, params):
    B = x_nchw.shape[0]
    M = B * 64

    # Glue: one pad + one constant-index take = tap-expanded conv1 im2col.
    xp = jnp.pad(x_nchw[:, 0].astype(jnp.float32), ((0, 0), (3, 3), (3, 3)))
    p1 = jnp.take(xp.reshape(B, 34 * 34), _GATHER_IDX, axis=1)      # (B, 64, 256)
    p1 = p1.reshape(M, 256).astype(jnp.bfloat16)
    mask = _valid_mask(B)

    flops = 2 * M * 256 * 1024 + 2 * M * 1024 * 128
    bytes_accessed = (p1.size * 2 + params["w1"].size * 2 + params["w2"].size * 2
                      + params["wl"].size * 4 + mask.size * 4 + 2 * 128 * 4
                      + 4 + B * 4)

    return pl.pallas_call(
        _make_kernel(B),
        out_shape=jax.ShapeDtypeStruct((B, 1), jnp.float32),
        in_specs=[_VMEM] * 8,
        out_specs=_VMEM,
        cost_estimate=pl.CostEstimate(flops=flops, transcendentals=128 + B,
                                      bytes_accessed=bytes_accessed),
        compiler_params=pltpu.CompilerParams(vmem_limit_bytes=32 * 1024 * 1024),
    )(p1, params["w1"], params["w2"], params["gamma"], params["beta"],
      params["wl"], params["bl"], mask)


# ------------------------- pure-JAX reference (check) ------------------------

def _reference_forward(x_nchw, params):
    dn = jax.lax.conv_dimension_numbers(x_nchw.shape, params["_w1_t"].shape,
                                        ("NCHW", "OIHW", "NCHW"))
    h = jax.lax.conv_general_dilated(x_nchw, params["_w1_t"], (2, 2),
                                     ((1, 1), (1, 1)), dimension_numbers=dn)
    h = jnp.where(h > 0, h, NEG_SLOPE * h)
    dn2 = jax.lax.conv_dimension_numbers(h.shape, params["_w2_t"].shape,
                                         ("NCHW", "OIHW", "NCHW"))
    h = jax.lax.conv_general_dilated(h, params["_w2_t"], (2, 2),
                                     ((1, 1), (1, 1)), dimension_numbers=dn2)
    mean = jnp.mean(h, axis=(0, 2, 3), keepdims=True)
    var = jnp.mean((h - mean) ** 2, axis=(0, 2, 3), keepdims=True)
    h = (h - mean) * jax.lax.rsqrt(var + EPS)
    h = h * params["gamma"].reshape(1, 128, 1, 1) + params["beta"].reshape(1, 128, 1, 1)
    h = jnp.where(h > 0, h, NEG_SLOPE * h)
    h = h.reshape(h.shape[0], -1)
    y = h @ params["_wl_t"].T + params["bl"].reshape(1, 1)
    return jax.nn.sigmoid(y)


if __name__ == "__main__":
    key = jax.random.PRNGKey(0)
    kx, kp = jax.random.split(key)
    # MNIST-shaped input (28x28 implied by Linear(128*7*7, 1)); small batch.
    x = jax.random.normal(kx, (2, 1, 28, 28), jnp.float32)
    params = init_params(kp)

    out = jax.block_until_ready(discriminator_forward(x, params))
    assert out.shape == (2, 1) and out.dtype == jnp.float32

    ref = jax.block_until_ready(_reference_forward(x, params))
    # bf16 matmul operands vs f32 reference -> slightly relaxed tolerance.
    assert jnp.allclose(out, ref, rtol=2e-2, atol=2e-2), (out, ref)

    print("KERNEL_OK")
</pallas_src>

<mosaic_0001>
module attributes {stable_mosaic.version = 11 : i64} {
  func.func @kernel(%arg0: memref<128x256xbf16, #tpu.memory_space<vmem>>, %arg1: memref<256x1024xbf16, #tpu.memory_space<vmem>>, %arg2: memref<1024x128xbf16, #tpu.memory_space<vmem>>, %arg3: memref<1x128xf32, #tpu.memory_space<vmem>>, %arg4: memref<1x128xf32, #tpu.memory_space<vmem>>, %arg5: memref<64x128xf32, #tpu.memory_space<vmem>>, %arg6: memref<1x1xf32, #tpu.memory_space<vmem>>, %arg7: memref<128x1xf32, #tpu.memory_space<vmem>>, %arg8: memref<2x1xf32, #tpu.memory_space<vmem>>) attributes {dimension_semantics = [], scalar_prefetch = 0 : i64, scratch_operands = 0 : i64, tpu.core_type = #tpu.core_type<tc>} {
    %c0 = arith.constant 0 : index
    %c0_0 = arith.constant 0 : index
    %0 = vector.load %arg0[%c0, %c0_0] : memref<128x256xbf16, #tpu.memory_space<vmem>>, vector<128x256xbf16>
    %c0_1 = arith.constant 0 : index
    %c0_2 = arith.constant 0 : index
    %1 = vector.load %arg1[%c0_1, %c0_2] : memref<256x1024xbf16, #tpu.memory_space<vmem>>, vector<256x1024xbf16>
    %cst = arith.constant dense<0.000000e+00> : vector<128x1024xf32>
    %2 = tpu.matmul %0, %1, %cst {dimension_numbers = #tpu.dot_dimension_numbers<[1], [0], [0], [1], [0, 0, 1, 1], [], []>} : vector<128x256xbf16>, vector<256x1024xbf16>, vector<128x1024xf32> -> vector<128x1024xf32>
    %cst_3 = arith.constant 0.000000e+00 : f32
    %3 = vector.broadcast %cst_3 : f32 to vector<128x1024xf32>
    %4 = arith.cmpf ogt, %2, %3 : vector<128x1024xf32>
    %cst_4 = arith.constant 2.000000e-01 : f32
    %5 = vector.broadcast %cst_4 : f32 to vector<128x1024xf32>
    %6 = arith.mulf %5, %2 : vector<128x1024xf32>
    %7 = arith.select %4, %2, %6 : vector<128x1024xi1>, vector<128x1024xf32>
    %8 = arith.truncf %7 : vector<128x1024xf32> to vector<128x1024xbf16>
    %c0_5 = arith.constant 0 : index
    %c0_6 = arith.constant 0 : index
    %9 = vector.load %arg2[%c0_5, %c0_6] : memref<1024x128xbf16, #tpu.memory_space<vmem>>, vector<1024x128xbf16>
    %cst_7 = arith.constant dense<0.000000e+00> : vector<128x128xf32>
    %10 = tpu.matmul %8, %9, %cst_7 {dimension_numbers = #tpu.dot_dimension_numbers<[1], [0], [0], [1], [0, 0, 1, 1], [], []>} : vector<128x1024xbf16>, vector<1024x128xbf16>, vector<128x128xf32> -> vector<128x128xf32>
    %c0_8 = arith.constant 0 : index
    %c0_9 = arith.constant 0 : index
    %11 = vector.load %arg7[%c0_8, %c0_9] : memref<128x1xf32, #tpu.memory_space<vmem>>, vector<128x1xf32>
    %12 = vector.broadcast %11 : vector<128x1xf32> to vector<128x128xf32>
    %13 = arith.mulf %10, %12 : vector<128x128xf32>
    %cst_10 = arith.constant dense<0.000000e+00> : vector<128xf32>
    %14 = vector.multi_reduction <add>, %13, %cst_10 [0] : vector<128x128xf32> to vector<128xf32>
    %15 = vector.shape_cast %14 : vector<128xf32> to vector<1x128xf32>
    %cst_11 = arith.constant 0.0102040814 : f32
    %16 = vector.broadcast %cst_11 : f32 to vector<1x128xf32>
    %17 = arith.mulf %15, %16 : vector<1x128xf32>
    %18 = vector.broadcast %17 : vector<1x128xf32> to vector<128x128xf32>
    %19 = arith.subf %10, %18 : vector<128x128xf32>
    %20 = arith.mulf %19, %19 : vector<128x128xf32>
    %21 = vector.broadcast %11 : vector<128x1xf32> to vector<128x128xf32>
    %22 = arith.mulf %20, %21 : vector<128x128xf32>
    %cst_12 = arith.constant dense<0.000000e+00> : vector<128xf32>
    %23 = vector.multi_reduction <add>, %22, %cst_12 [0] : vector<128x128xf32> to vector<128xf32>
    %24 = vector.shape_cast %23 : vector<128xf32> to vector<1x128xf32>
    %cst_13 = arith.constant 0.0102040814 : f32
    %25 = vector.broadcast %cst_13 : f32 to vector<1x128xf32>
    %26 = arith.mulf %24, %25 : vector<1x128xf32>
    %c0_14 = arith.constant 0 : index
    %c0_15 = arith.constant 0 : index
    %27 = vector.load %arg3[%c0_14, %c0_15] : memref<1x128xf32, #tpu.memory_space<vmem>>, vector<1x128xf32>
    %cst_16 = arith.constant 9.99999974E-6 : f32
    %28 = vector.broadcast %cst_16 : f32 to vector<1x128xf32>
    %29 = arith.addf %26, %28 : vector<1x128xf32>
    %30 = math.rsqrt %29 : vector<1x128xf32>
    %31 = arith.mulf %27, %30 : vector<1x128xf32>
    %32 = vector.broadcast %31 : vector<1x128xf32> to vector<128x128xf32>
    %33 = arith.mulf %19, %32 : vector<128x128xf32>
    %c0_17 = arith.constant 0 : index
    %c0_18 = arith.constant 0 : index
    %34 = vector.load %arg4[%c0_17, %c0_18] : memref<1x128xf32, #tpu.memory_space<vmem>>, vector<1x128xf32>
    %35 = vector.broadcast %34 : vector<1x128xf32> to vector<128x128xf32>
    %36 = arith.addf %33, %35 : vector<128x128xf32>
    %cst_19 = arith.constant 0.000000e+00 : f32
    %37 = vector.broadcast %cst_19 : f32 to vector<128x128xf32>
    %38 = arith.cmpf ogt, %36, %37 : vector<128x128xf32>
    %cst_20 = arith.constant 2.000000e-01 : f32
    %39 = vector.broadcast %cst_20 : f32 to vector<128x128xf32>
    %40 = arith.mulf %39, %36 : vector<128x128xf32>
    %41 = arith.select %38, %36, %40 : vector<128x128xi1>, vector<128x128xf32>
    %c0_21 = arith.constant 0 : index
    %c0_22 = arith.constant 0 : index
    %42 = vector.load %arg5[%c0_21, %c0_22] : memref<64x128xf32, #tpu.memory_space<vmem>>, vector<64x128xf32>
    %43 = vector.extract_strided_slice %41 {offsets = [0, 0], sizes = [64, 128], strides = [1, 1]} : vector<128x128xf32> to vector<64x128xf32>
    %44 = arith.mulf %43, %42 : vector<64x128xf32>
    %cst_23 = arith.constant dense<0.000000e+00> : vector<128xf32>
    %45 = vector.multi_reduction <add>, %44, %cst_23 [0] : vector<64x128xf32> to vector<128xf32>
    %46 = vector.shape_cast %45 : vector<128xf32> to vector<1x128xf32>
    %47 = vector.extract_strided_slice %41 {offsets = [64, 0], sizes = [64, 128], strides = [1, 1]} : vector<128x128xf32> to vector<64x128xf32>
    %48 = arith.mulf %47, %42 : vector<64x128xf32>
    %cst_24 = arith.constant dense<0.000000e+00> : vector<128xf32>
    %49 = vector.multi_reduction <add>, %48, %cst_24 [0] : vector<64x128xf32> to vector<128xf32>
    %50 = vector.shape_cast %49 : vector<128xf32> to vector<1x128xf32>
    %51 = tpu.concatenate %46, %50 in 0 : vector<1x128xf32>, vector<1x128xf32> -> vector<2x128xf32>
    %cst_25 = arith.constant dense<0.000000e+00> : vector<2xf32>
    %52 = vector.multi_reduction <add>, %51, %cst_25 [1] : vector<2x128xf32> to vector<2xf32>
    %53 = vector.shape_cast %52 : vector<2xf32> to vector<2x1xf32>
    %c0_26 = arith.constant 0 : index
    %c0_27 = arith.constant 0 : index
    %54 = vector.load %arg6[%c0_26, %c0_27] : memref<1x1xf32, #tpu.memory_space<vmem>>, vector<1x1xf32>
    %55 = vector.broadcast %54 : vector<1x1xf32> to vector<2x1xf32>
    %56 = arith.addf %53, %55 : vector<2x1xf32>
    %57 = arith.negf %56 : vector<2x1xf32>
    %58 = math.exp %57 : vector<2x1xf32>
    %cst_28 = arith.constant 1.000000e+00 : f32
    %59 = vector.broadcast %cst_28 : f32 to vector<2x1xf32>
    %60 = arith.addf %59, %58 : vector<2x1xf32>
    %61 = arith.divf %59, %60 : vector<2x1xf32>
    %c0_29 = arith.constant 0 : index
    %c0_30 = arith.constant 0 : index
    %62 = vector.load %arg8[%c0_29, %c0_30] : memref<2x1xf32, #tpu.memory_space<vmem>>, vector<2x1xf32>
    tpu.vector_store %arg8[%c0_29, %c0_30], %61 {strides = array<i32>} : memref<2x1xf32, #tpu.memory_space<vmem>>, vector<2x1xf32>,
    return
  }
}

</mosaic_0001>

<llo_original>
// kernel: discriminator_forward.1
$region0: #{discriminator_forward.1}
  #allocation0 [shape = 'u32[]', space=smem, size = 0x4, offset = 0x4, fixed_abs, tag = 'smem constant byte address 0x4 - core index']
  #allocation1 [shape = 'u32[144,128]{1,0:T(1,128)}', space=vmem, size = 0x12000, scoped, tag = 'internal scratch']
  #allocation2 [shape = 'f32[1,1]{1,0:T(1,128)S(1)}', space=vmem, size = 0x200, scoped, tag = 'scoped memory for discriminator_forward.1']
  %s0 = inlined_call_operand.vmem [shape: bf16[128,256], index: 0, kind: input, shape index: {}]
  %s1 = inlined_call_operand.vmem [shape: bf16[256,1024], index: 1, kind: input, shape index: {}]
  %s2 = inlined_call_operand.vmem [shape: bf16[1024,128], index: 2, kind: input, shape index: {}]
  %s3 = inlined_call_operand.vmem [shape: f32[1,128], index: 3, kind: input, shape index: {}]
  %s4 = inlined_call_operand.vmem [shape: f32[1,128], index: 4, kind: input, shape index: {}]
  %s5 = inlined_call_operand.vmem [shape: f32[64,128], index: 5, kind: input, shape index: {}]
  %s6 = inlined_call_operand.<no memory space> [shape: f32[1,1], index: 6, kind: input, shape index: {}]
  %s7 = inlined_call_operand.vmem [shape: f32[128,1], index: 7, kind: input, shape index: {}]
  %s8 = inlined_call_operand.vmem [shape: f32[2,1], index: 8, kind: output, shape index: {}]
  %s9 = sld [smem:[#allocation0]]
  $region42: #{discriminator_forward.1} parent=0
    _
  %s11 = ssub.s32 1, %s9
  %s12 = scalar_select 0, %s11, %s9
  %v13 = vstv %s6
  %14 = vst [vmem:[#allocation2] sm:$0x1] %v13
  // Predicated region
  $region2: #{discriminator_forward.1} parent=0 // pred_check
    _
  $region3: #{discriminator_forward.1} parent=0 // pred_check_branch
    %16 = sbr.rel (0) target = $region5
  $region4: #{discriminator_forward.1} parent=0 // pred_region
    _
  $region5: #{discriminator_forward.1} parent=0 // pred_fallthru
    _
  // Predicated region
  $region6: #{discriminator_forward.1} parent=0 // pred_check
    _
  $region7: #{discriminator_forward.1} parent=0 // pred_check_branch
    %18 = sbr.rel (0) target = $region9
  $region8: #{discriminator_forward.1} parent=0 // pred_region
    _
  $region9: #{discriminator_forward.1} parent=0 // pred_fallthru
    _
  // Predicated region
  $region10: #{discriminator_forward.1} parent=0 // pred_check
    _
  $region11: #{discriminator_forward.1} parent=0 // pred_check_branch
    %20 = sbr.rel (0) target = $region13
  $region12: #{discriminator_forward.1} parent=0 // pred_region
    _
  $region13: #{discriminator_forward.1} parent=0 // pred_fallthru
    _
  // Predicated region
  $region14: #{discriminator_forward.1} parent=0 // pred_check
    _
  $region15: #{discriminator_forward.1} parent=0 // pred_check_branch
    %22 = sbr.rel (0) target = $region17
  $region16: #{discriminator_forward.1} parent=0 // pred_region
    _
  $region17: #{discriminator_forward.1} parent=0 // pred_fallthru
    _
  // Predicated region
  $region18: #{discriminator_forward.1} parent=0 // pred_check
    _
  $region19: #{discriminator_forward.1} parent=0 // pred_check_branch
    %24 = sbr.rel (0) target = $region21
  $region20: #{discriminator_forward.1} parent=0 // pred_region
    _
  $region21: #{discriminator_forward.1} parent=0 // pred_fallthru
    _
  // Predicated region
  $region22: #{discriminator_forward.1} parent=0 // pred_check
    _
  $region23: #{discriminator_forward.1} parent=0 // pred_check_branch
    %26 = sbr.rel (0) target = $region25
  $region24: #{discriminator_forward.1} parent=0 // pred_region
    _
  $region25: #{discriminator_forward.1} parent=0 // pred_fallthru
    _
  // Predicated region
  $region26: #{discriminator_forward.1} parent=0 // pred_check
    _
  $region27: #{discriminator_forward.1} parent=0 // pred_check_branch
    %28 = sbr.rel (0) target = $region29
  $region28: #{discriminator_forward.1} parent=0 // pred_region
    _
  $region29: #{discriminator_forward.1} parent=0 // pred_fallthru
    _
  // Predicated region
  $region30: #{discriminator_forward.1} parent=0 // pred_check
    _
  $region31: #{discriminator_forward.1} parent=0 // pred_check_branch
    %30 = sbr.rel (0) target = $region33
  $region32: #{discriminator_forward.1} parent=0 // pred_region
    _
  $region33: #{discriminator_forward.1} parent=0 // pred_fallthru
    _
  %v32 = vld [vmem:[%s0] sm:$0xff]
  %v33 = vld [vmem:[%s0 + $0x8] sm:$0xff]
  %v34 = vld [vmem:[%s0 + $0x10] sm:$0xff]
  %v35 = vld [vmem:[%s0 + $0x18] sm:$0xff]
  %v36 = vld [vmem:[%s0 + $0x20] sm:$0xff]
  %v37 = vld [vmem:[%s0 + $0x28] sm:$0xff]
  %v38 = vld [vmem:[%s0 + $0x30] sm:$0xff]
  %v39 = vld [vmem:[%s0 + $0x38] sm:$0xff]
  %v40 = vld [vmem:[%s0 + $0x40] sm:$0xff]
  %v41 = vld [vmem:[%s0 + $0x48] sm:$0xff]
  %v42 = vld [vmem:[%s0 + $0x50] sm:$0xff]
  %v43 = vld [vmem:[%s0 + $0x58] sm:$0xff]
  %v44 = vld [vmem:[%s0 + $0x60] sm:$0xff]
  %v45 = vld [vmem:[%s0 + $0x68] sm:$0xff]
  %v46 = vld [vmem:[%s0 + $0x70] sm:$0xff]
  %v47 = vld [vmem:[%s0 + $0x78] sm:$0xff]
  %v48 = vld [vmem:[%s1] sm:$0xff]
  %v49 = vld [vmem:[%s1 + $0x8] sm:$0xff]
  %v50 = vld [vmem:[%s1 + $0x10] sm:$0xff]
  %v51 = vld [vmem:[%s1 + $0x18] sm:$0xff]
  %v52 = vld [vmem:[%s1 + $0x20] sm:$0xff]
  %v53 = vld [vmem:[%s1 + $0x28] sm:$0xff]
  %v54 = vld [vmem:[%s1 + $0x30] sm:$0xff]
  %v55 = vld [vmem:[%s1 + $0x38] sm:$0xff]
  %v56 = vld [vmem:[%s1 + $0x40] sm:$0xff]
  %v57 = vld [vmem:[%s1 + $0x48] sm:$0xff]
  %v58 = vld [vmem:[%s1 + $0x50] sm:$0xff]
  %v59 = vld [vmem:[%s1 + $0x58] sm:$0xff]
  %v60 = vld [vmem:[%s1 + $0x60] sm:$0xff]
  %v61 = vld [vmem:[%s1 + $0x68] sm:$0xff]
  %v62 = vld [vmem:[%s1 + $0x70] sm:$0xff]
  %v63 = vld [vmem:[%s1 + $0x78] sm:$0xff]
  %v64 = vld [vmem:[%s1 + $0x80] sm:$0xff]
  %v65 = vld [vmem:[%s1 + $0x88] sm:$0xff]
  %v66 = vld [vmem:[%s1 + $0x90] sm:$0xff]
  %v67 = vld [vmem:[%s1 + $0x98] sm:$0xff]
  %v68 = vld [vmem:[%s1 + $0xa0] sm:$0xff]
  %v69 = vld [vmem:[%s1 + $0xa8] sm:$0xff]
  %v70 = vld [vmem:[%s1 + $0xb0] sm:$0xff]
  %v71 = vld [vmem:[%s1 + $0xb8] sm:$0xff]
  %v72 = vld [vmem:[%s1 + $0xc0] sm:$0xff]
  %v73 = vld [vmem:[%s1 + $0xc8] sm:$0xff]
  %v74 = vld [vmem:[%s1 + $0xd0] sm:$0xff]
  %v75 = vld [vmem:[%s1 + $0xd8] sm:$0xff]
  %v76 = vld [vmem:[%s1 + $0xe0] sm:$0xff]
  %v77 = vld [vmem:[%s1 + $0xe8] sm:$0xff]
  %v78 = vld [vmem:[%s1 + $0xf0] sm:$0xff]
  %v79 = vld [vmem:[%s1 + $0xf8] sm:$0xff]
  %v80 = vld [vmem:[%s1 + $0x100] sm:$0xff]
  %v81 = vld [vmem:[%s1 + $0x108] sm:$0xff]
  %v82 = vld [vmem:[%s1 + $0x110] sm:$0xff]
  %v83 = vld [vmem:[%s1 + $0x118] sm:$0xff]
  %v84 = vld [vmem:[%s1 + $0x120] sm:$0xff]
  %v85 = vld [vmem:[%s1 + $0x128] sm:$0xff]
  %v86 = vld [vmem:[%s1 + $0x130] sm:$0xff]
  %v87 = vld [vmem:[%s1 + $0x138] sm:$0xff]
  %v88 = vld [vmem:[%s1 + $0x140] sm:$0xff]
  %v89 = vld [vmem:[%s1 + $0x148] sm:$0xff]
  %v90 = vld [vmem:[%s1 + $0x150] sm:$0xff]
  %v91 = vld [vmem:[%s1 + $0x158] sm:$0xff]
  %v92 = vld [vmem:[%s1 + $0x160] sm:$0xff]
  %v93 = vld [vmem:[%s1 + $0x168] sm:$0xff]
  %v94 = vld [vmem:[%s1 + $0x170] sm:$0xff]
  %v95 = vld [vmem:[%s1 + $0x178] sm:$0xff]
  %v96 = vld [vmem:[%s1 + $0x180] sm:$0xff]
  %v97 = vld [vmem:[%s1 + $0x188] sm:$0xff]
  %v98 = vld [vmem:[%s1 + $0x190] sm:$0xff]
  %v99 = vld [vmem:[%s1 + $0x198] sm:$0xff]
  %v100 = vld [vmem:[%s1 + $0x1a0] sm:$0xff]
  %v101 = vld [vmem:[%s1 + $0x1a8] sm:$0xff]
  %v102 = vld [vmem:[%s1 + $0x1b0] sm:$0xff]
  %v103 = vld [vmem:[%s1 + $0x1b8] sm:$0xff]
  %v104 = vld [vmem:[%s1 + $0x1c0] sm:$0xff]
  %v105 = vld [vmem:[%s1 + $0x1c8] sm:$0xff]
  %v106 = vld [vmem:[%s1 + $0x1d0] sm:$0xff]
  %v107 = vld [vmem:[%s1 + $0x1d8] sm:$0xff]
  %v108 = vld [vmem:[%s1 + $0x1e0] sm:$0xff]
  %v109 = vld [vmem:[%s1 + $0x1e8] sm:$0xff]
  %v110 = vld [vmem:[%s1 + $0x1f0] sm:$0xff]
  %v111 = vld [vmem:[%s1 + $0x1f8] sm:$0xff]
  %v112 = vld [vmem:[%s1 + $0x200] sm:$0xff]
  %v113 = vld [vmem:[%s1 + $0x208] sm:$0xff]
  %v114 = vld [vmem:[%s1 + $0x210] sm:$0xff]
  %v115 = vld [vmem:[%s1 + $0x218] sm:$0xff]
  %v116 = vld [vmem:[%s1 + $0x220] sm:$0xff]
  %v117 = vld [vmem:[%s1 + $0x228] sm:$0xff]
  %v118 = vld [vmem:[%s1 + $0x230] sm:$0xff]
  %v119 = vld [vmem:[%s1 + $0x238] sm:$0xff]
  %v120 = vld [vmem:[%s1 + $0x240] sm:$0xff]
  %v121 = vld [vmem:[%s1 + $0x248] sm:$0xff]
  %v122 = vld [vmem:[%s1 + $0x250] sm:$0xff]
  %v123 = vld [vmem:[%s1 + $0x258] sm:$0xff]
  %v124 = vld [vmem:[%s1 + $0x260] sm:$0xff]
  %v125 = vld [vmem:[%s1 + $0x268] sm:$0xff]
  %v126 = vld [vmem:[%s1 + $0x270] sm:$0xff]
  %v127 = vld [vmem:[%s1 + $0x278] sm:$0xff]
  %v128 = vld [vmem:[%s1 + $0x280] sm:$0xff]
  %v129 = vld [vmem:[%s1 + $0x288] sm:$0xff]
  %v130 = vld [vmem:[%s1 + $0x290] sm:$0xff]
  %v131 = vld [vmem:[%s1 + $0x298] sm:$0xff]
  %v132 = vld [vmem:[%s1 + $0x2a0] sm:$0xff]
  %v133 = vld [vmem:[%s1 + $0x2a8] sm:$0xff]
  %v134 = vld [vmem:[%s1 + $0x2b0] sm:$0xff]
  %v135 = vld [vmem:[%s1 + $0x2b8] sm:$0xff]
  %v136 = vld [vmem:[%s1 + $0x2c0] sm:$0xff]
  %v137 = vld [vmem:[%s1 + $0x2c8] sm:$0xff]
  %v138 = vld [vmem:[%s1 + $0x2d0] sm:$0xff]
  %v139 = vld [vmem:[%s1 + $0x2d8] sm:$0xff]
  %v140 = vld [vmem:[%s1 + $0x2e0] sm:$0xff]
  %v141 = vld [vmem:[%s1 + $0x2e8] sm:$0xff]
  %v142 = vld [vmem:[%s1 + $0x2f0] sm:$0xff]
  %v143 = vld [vmem:[%s1 + $0x2f8] sm:$0xff]
  %v144 = vld [vmem:[%s1 + $0x300] sm:$0xff]
  %v145 = vld [vmem:[%s1 + $0x308] sm:$0xff]
  %v146 = vld [vmem:[%s1 + $0x310] sm:$0xff]
  %v147 = vld [vmem:[%s1 + $0x318] sm:$0xff]
  %v148 = vld [vmem:[%s1 + $0x320] sm:$0xff]
  %v149 = vld [vmem:[%s1 + $0x328] sm:$0xff]
  %v150 = vld [vmem:[%s1 + $0x330] sm:$0xff]
  %v151 = vld [vmem:[%s1 + $0x338] sm:$0xff]
  %v152 = vld [vmem:[%s1 + $0x340] sm:$0xff]
  %v153 = vld [vmem:[%s1 + $0x348] sm:$0xff]
  %v154 = vld [vmem:[%s1 + $0x350] sm:$0xff]
  %v155 = vld [vmem:[%s1 + $0x358] sm:$0xff]
  %v156 = vld [vmem:[%s1 + $0x360] sm:$0xff]
  %v157 = vld [vmem:[%s1 + $0x368] sm:$0xff]
  %v158 = vld [vmem:[%s1 + $0x370] sm:$0xff]
  %v159 = vld [vmem:[%s1 + $0x378] sm:$0xff]
  %v160 = vld [vmem:[%s1 + $0x380] sm:$0xff]
  %v161 = vld [vmem:[%s1 + $0x388] sm:$0xff]
  %v162 = vld [vmem:[%s1 + $0x390] sm:$0xff]
  %v163 = vld [vmem:[%s1 + $0x398] sm:$0xff]
  %v164 = vld [vmem:[%s1 + $0x3a0] sm:$0xff]
  %v165 = vld [vmem:[%s1 + $0x3a8] sm:$0xff]
  %v166 = vld [vmem:[%s1 + $0x3b0] sm:$0xff]
  %v167 = vld [vmem:[%s1 + $0x3b8] sm:$0xff]
  %v168 = vld [vmem:[%s1 + $0x3c0] sm:$0xff]
  %v169 = vld [vmem:[%s1 + $0x3c8] sm:$0xff]
  %v170 = vld [vmem:[%s1 + $0x3d0] sm:$0xff]
  %v171 = vld [vmem:[%s1 + $0x3d8] sm:$0xff]
  %v172 = vld [vmem:[%s1 + $0x3e0] sm:$0xff]
  %v173 = vld [vmem:[%s1 + $0x3e8] sm:$0xff]
  %v174 = vld [vmem:[%s1 + $0x3f0] sm:$0xff]
  %v175 = vld [vmem:[%s1 + $0x3f8] sm:$0xff]
  %v192 = vunpack.c.l.b16 %v32
  %v193 = vunpack.c.h.b16 %v32
  %v194 = vunpack.c.l.b16 %v33
  %v195 = vunpack.c.h.b16 %v33
  %v196 = vunpack.c.l.b16 %v34
  %v197 = vunpack.c.h.b16 %v34
  %v198 = vunpack.c.l.b16 %v35
  %v199 = vunpack.c.h.b16 %v35
  %v200 = vunpack.c.l.b16 %v36
  %v201 = vunpack.c.h.b16 %v36
  %v202 = vunpack.c.l.b16 %v37
  %v203 = vunpack.c.h.b16 %v37
  %v204 = vunpack.c.l.b16 %v38
  %v205 = vunpack.c.h.b16 %v38
  %v206 = vunpack.c.l.b16 %v39
  %v207 = vunpack.c.h.b16 %v39
  %v208 = vunpack.c.l.b16 %v40
  %v209 = vunpack.c.h.b16 %v40
  %v210 = vunpack.c.l.b16 %v41
  %v211 = vunpack.c.h.b16 %v41
  %v212 = vunpack.c.l.b16 %v42
  %v213 = vunpack.c.h.b16 %v42
  %v214 = vunpack.c.l.b16 %v43
  %v215 = vunpack.c.h.b16 %v43
  %v216 = vunpack.c.l.b16 %v44
  %v217 = vunpack.c.h.b16 %v44
  %v218 = vunpack.c.l.b16 %v45
  %v219 = vunpack.c.h.b16 %v45
  %v220 = vunpack.c.l.b16 %v46
  %v221 = vunpack.c.h.b16 %v46
  %v222 = vunpack.c.l.b16 %v47
  %v223 = vunpack.c.h.b16 %v47
  %v224 = vpack.c.b16 %v194, %v192
  %v225 = vpack.c.b16 %v195, %v193
  %v226 = vpack.c.b16 %v198, %v196
  %v227 = vpack.c.b16 %v199, %v197
  %v228 = vpack.c.b16 %v202, %v200
  %v229 = vpack.c.b16 %v203, %v201
  %v230 = vpack.c.b16 %v206, %v204
  %v231 = vpack.c.b16 %v207, %v205
  %v232 = vpack.c.b16 %v210, %v208
  %v233 = vpack.c.b16 %v211, %v209
  %v234 = vpack.c.b16 %v214, %v212
  %v235 = vpack.c.b16 %v215, %v213
  %v236 = vpack.c.b16 %v218, %v216
  %v237 = vpack.c.b16 %v219, %v217
  %v238 = vpack.c.b16 %v222, %v220
  %v239 = vpack.c.b16 %v223, %v221
  %v384 = vunpack.c.l.b16 %v48
  %v385 = vunpack.c.h.b16 %v48
  %v386 = vunpack.c.l.b16 %v49
  %v387 = vunpack.c.h.b16 %v49
  %v388 = vunpack.c.l.b16 %v50
  %v389 = vunpack.c.h.b16 %v50
  %v390 = vunpack.c.l.b16 %v51
  %v391 = vunpack.c.h.b16 %v51
  %v392 = vunpack.c.l.b16 %v52
  %v393 = vunpack.c.h.b16 %v52
  %v394 = vunpack.c.l.b16 %v53
  %v395 = vunpack.c.h.b16 %v53
  %v396 = vunpack.c.l.b16 %v54
  %v397 = vunpack.c.h.b16 %v54
  %v398 = vunpack.c.l.b16 %v55
  %v399 = vunpack.c.h.b16 %v55
  %v400 = vunpack.c.l.b16 %v56
  %v401 = vunpack.c.h.b16 %v56
  %v402 = vunpack.c.l.b16 %v57
  %v403 = vunpack.c.h.b16 %v57
  %v404 = vunpack.c.l.b16 %v58
  %v405 = vunpack.c.h.b16 %v58
  %v406 = vunpack.c.l.b16 %v59
  %v407 = vunpack.c.h.b16 %v59
  %v408 = vunpack.c.l.b16 %v60
  %v409 = vunpack.c.h.b16 %v60
  %v410 = vunpack.c.l.b16 %v61
  %v411 = vunpack.c.h.b16 %v61
  %v412 = vunpack.c.l.b16 %v62
  %v413 = vunpack.c.h.b16 %v62
  %v414 = vunpack.c.l.b16 %v63
  %v415 = vunpack.c.h.b16 %v63
  %v416 = vunpack.c.l.b16 %v64
  %v417 = vunpack.c.h.b16 %v64
  %v418 = vunpack.c.l.b16 %v65
  %v419 = vunpack.c.h.b16 %v65
  %v420 = vunpack.c.l.b16 %v66
  %v421 = vunpack.c.h.b16 %v66
  %v422 = vunpack.c.l.b16 %v67
  %v423 = vunpack.c.h.b16 %v67
  %v424 = vunpack.c.l.b16 %v68
  %v425 = vunpack.c.h.b16 %v68
  %v426 = vunpack.c.l.b16 %v69
  %v427 = vunpack.c.h.b16 %v69
  %v428 = vunpack.c.l.b16 %v70
  %v429 = vunpack.c.h.b16 %v70
  %v430 = vunpack.c.l.b16 %v71
  %v431 = vunpack.c.h.b16 %v71
  %v432 = vunpack.c.l.b16 %v72
  %v433 = vunpack.c.h.b16 %v72
  %v434 = vunpack.c.l.b16 %v73
  %v435 = vunpack.c.h.b16 %v73
  %v436 = vunpack.c.l.b16 %v74
  %v437 = vunpack.c.h.b16 %v74
  %v438 = vunpack.c.l.b16 %v75
  %v439 = vunpack.c.h.b16 %v75
  %v440 = vunpack.c.l.b16 %v76
  %v441 = vunpack.c.h.b16 %v76
  %v442 = vunpack.c.l.b16 %v77
  %v443 = vunpack.c.h.b16 %v77
  %v444 = vunpack.c.l.b16 %v78
  %v445 = vunpack.c.h.b16 %v78
  %v446 = vunpack.c.l.b16 %v79
  %v447 = vunpack.c.h.b16 %v79
  %v448 = vunpack.c.l.b16 %v80
  %v449 = vunpack.c.h.b16 %v80
  %v450 = vunpack.c.l.b16 %v81
  %v451 = vunpack.c.h.b16 %v81
  %v452 = vunpack.c.l.b16 %v82
  %v453 = vunpack.c.h.b16 %v82
  %v454 = vunpack.c.l.b16 %v83
  %v455 = vunpack.c.h.b16 %v83
  %v456 = vunpack.c.l.b16 %v84
  %v457 = vunpack.c.h.b16 %v84
  %v458 = vunpack.c.l.b16 %v85
  %v459 = vunpack.c.h.b16 %v85
  %v460 = vunpack.c.l.b16 %v86
  %v461 = vunpack.c.h.b16 %v86
  %v462 = vunpack.c.l.b16 %v87
  %v463 = vunpack.c.h.b16 %v87
  %v464 = vunpack.c.l.b16 %v88
  %v465 = vunpack.c.h.b16 %v88
  %v466 = vunpack.c.l.b16 %v89
  %v467 = vunpack.c.h.b16 %v89
  %v468 = vunpack.c.l.b16 %v90
  %v469 = vunpack.c.h.b16 %v90
  %v470 = vunpack.c.l.b16 %v91
  %v471 = vunpack.c.h.b16 %v91
  %v472 = vunpack.c.l.b16 %v92
  %v473 = vunpack.c.h.b16 %v92
  %v474 = vunpack.c.l.b16 %v93
  %v475 = vunpack.c.h.b16 %v93
  %v476 = vunpack.c.l.b16 %v94
  %v477 = vunpack.c.h.b16 %v94
  %v478 = vunpack.c.l.b16 %v95
  %v479 = vunpack.c.h.b16 %v95
  %v480 = vunpack.c.l.b16 %v96
  %v481 = vunpack.c.h.b16 %v96
  %v482 = vunpack.c.l.b16 %v97
  %v483 = vunpack.c.h.b16 %v97
  %v484 = vunpack.c.l.b16 %v98
  %v485 = vunpack.c.h.b16 %v98
  %v486 = vunpack.c.l.b16 %v99
  %v487 = vunpack.c.h.b16 %v99
  %v488 = vunpack.c.l.b16 %v100
  %v489 = vunpack.c.h.b16 %v100
  %v490 = vunpack.c.l.b16 %v101
  %v491 = vunpack.c.h.b16 %v101
  %v492 = vunpack.c.l.b16 %v102
  %v493 = vunpack.c.h.b16 %v102
  %v494 = vunpack.c.l.b16 %v103
  %v495 = vunpack.c.h.b16 %v103
  %v496 = vunpack.c.l.b16 %v104
  %v497 = vunpack.c.h.b16 %v104
  %v498 = vunpack.c.l.b16 %v105
  %v499 = vunpack.c.h.b16 %v105
  %v500 = vunpack.c.l.b16 %v106
  %v501 = vunpack.c.h.b16 %v106
  %v502 = vunpack.c.l.b16 %v107
  %v503 = vunpack.c.h.b16 %v107
  %v504 = vunpack.c.l.b16 %v108
  %v505 = vunpack.c.h.b16 %v108
  %v506 = vunpack.c.l.b16 %v109
  %v507 = vunpack.c.h.b16 %v109
  %v508 = vunpack.c.l.b16 %v110
  %v509 = vunpack.c.h.b16 %v110
  %v510 = vunpack.c.l.b16 %v111
  %v511 = vunpack.c.h.b16 %v111
  %v512 = vunpack.c.l.b16 %v112
  %v513 = vunpack.c.h.b16 %v112
  %v514 = vunpack.c.l.b16 %v113
  %v515 = vunpack.c.h.b16 %v113
  %v516 = vunpack.c.l.b16 %v114
  %v517 = vunpack.c.h.b16 %v114
  %v518 = vunpack.c.l.b16 %v115
  %v519 = vunpack.c.h.b16 %v115
  %v520 = vunpack.c.l.b16 %v116
  %v521 = vunpack.c.h.b16 %v116
  %v522 = vunpack.c.l.b16 %v117
  %v523 = vunpack.c.h.b16 %v117
  %v524 = vunpack.c.l.b16 %v118
  %v525 = vunpack.c.h.b16 %v118
  %v526 = vunpack.c.l.b16 %v119
  %v527 = vunpack.c.h.b16 %v119
  %v528 = vunpack.c.l.b16 %v120
  %v529 = vunpack.c.h.b16 %v120
  %v530 = vunpack.c.l.b16 %v121
  %v531 = vunpack.c.h.b16 %v121
  %v532 = vunpack.c.l.b16 %v122
  %v533 = vunpack.c.h.b16 %v122
  %v534 = vunpack.c.l.b16 %v123
  %v535 = vunpack.c.h.b16 %v123
  %v536 = vunpack.c.l.b16 %v124
  %v537 = vunpack.c.h.b16 %v124
  %v538 = vunpack.c.l.b16 %v125
  %v539 = vunpack.c.h.b16 %v125
  %v540 = vunpack.c.l.b16 %v126
  %v541 = vunpack.c.h.b16 %v126
  %v542 = vunpack.c.l.b16 %v127
  %v543 = vunpack.c.h.b16 %v127
  %v544 = vunpack.c.l.b16 %v128
  %v545 = vunpack.c.h.b16 %v128
  %v546 = vunpack.c.l.b16 %v129
  %v547 = vunpack.c.h.b16 %v129
  %v548 = vunpack.c.l.b16 %v130
  %v549 = vunpack.c.h.b16 %v130
  %v550 = vunpack.c.l.b16 %v131
  %v551 = vunpack.c.h.b16 %v131
  %v552 = vunpack.c.l.b16 %v132
  %v553 = vunpack.c.h.b16 %v132
  %v554 = vunpack.c.l.b16 %v133
  %v555 = vunpack.c.h.b16 %v133
  %v556 = vunpack.c.l.b16 %v134
  %v557 = vunpack.c.h.b16 %v134
  %v558 = vunpack.c.l.b16 %v135
  %v559 = vunpack.c.h.b16 %v135
  %v560 = vunpack.c.l.b16 %v136
  %v561 = vunpack.c.h.b16 %v136
  %v562 = vunpack.c.l.b16 %v137
  %v563 = vunpack.c.h.b16 %v137
  %v564 = vunpack.c.l.b16 %v138
  %v565 = vunpack.c.h.b16 %v138
  %v566 = vunpack.c.l.b16 %v139
  %v567 = vunpack.c.h.b16 %v139
  %v568 = vunpack.c.l.b16 %v140
  %v569 = vunpack.c.h.b16 %v140
  %v570 = vunpack.c.l.b16 %v141
  %v571 = vunpack.c.h.b16 %v141
  %v572 = vunpack.c.l.b16 %v142
  %v573 = vunpack.c.h.b16 %v142
  %v574 = vunpack.c.l.b16 %v143
  %v575 = vunpack.c.h.b16 %v143
  %v576 = vunpack.c.l.b16 %v144
  %v577 = vunpack.c.h.b16 %v144
  %v578 = vunpack.c.l.b16 %v145
  %v579 = vunpack.c.h.b16 %v145
  %v580 = vunpack.c.l.b16 %v146
  %v581 = vunpack.c.h.b16 %v146
  %v582 = vunpack.c.l.b16 %v147
  %v583 = vunpack.c.h.b16 %v147
  %v584 = vunpack.c.l.b16 %v148
  %v585 = vunpack.c.h.b16 %v148
  %v586 = vunpack.c.l.b16 %v149
  %v587 = vunpack.c.h.b16 %v149
  %v588 = vunpack.c.l.b16 %v150
  %v589 = vunpack.c.h.b16 %v150
  %v590 = vunpack.c.l.b16 %v151
  %v591 = vunpack.c.h.b16 %v151
  %v592 = vunpack.c.l.b16 %v152
  %v593 = vunpack.c.h.b16 %v152
  %v594 = vunpack.c.l.b16 %v153
  %v595 = vunpack.c.h.b16 %v153
  %v596 = vunpack.c.l.b16 %v154
  %v597 = vunpack.c.h.b16 %v154
  %v598 = vunpack.c.l.b16 %v155
  %v599 = vunpack.c.h.b16 %v155
  %v600 = vunpack.c.l.b16 %v156
  %v601 = vunpack.c.h.b16 %v156
  %v602 = vunpack.c.l.b16 %v157
  %v603 = vunpack.c.h.b16 %v157
  %v604 = vunpack.c.l.b16 %v158
  %v605 = vunpack.c.h.b16 %v158
  %v606 = vunpack.c.l.b16 %v159
  %v607 = vunpack.c.h.b16 %v159
  %v608 = vunpack.c.l.b16 %v160
  %v609 = vunpack.c.h.b16 %v160
  %v610 = vunpack.c.l.b16 %v161
  %v611 = vunpack.c.h.b16 %v161
  %v612 = vunpack.c.l.b16 %v162
  %v613 = vunpack.c.h.b16 %v162
  %v614 = vunpack.c.l.b16 %v163
  %v615 = vunpack.c.h.b16 %v163
  %v616 = vunpack.c.l.b16 %v164
  %v617 = vunpack.c.h.b16 %v164
  %v618 = vunpack.c.l.b16 %v165
  %v619 = vunpack.c.h.b16 %v165
  %v620 = vunpack.c.l.b16 %v166
  %v621 = vunpack.c.h.b16 %v166
  %v622 = vunpack.c.l.b16 %v167
  %v623 = vunpack.c.h.b16 %v167
  %v624 = vunpack.c.l.b16 %v168
  %v625 = vunpack.c.h.b16 %v168
  %v626 = vunpack.c.l.b16 %v169
  %v627 = vunpack.c.h.b16 %v169
  %v628 = vunpack.c.l.b16 %v170
  %v629 = vunpack.c.h.b16 %v170
  %v630 = vunpack.c.l.b16 %v171
  %v631 = vunpack.c.h.b16 %v171
  %v632 = vunpack.c.l.b16 %v172
  %v633 = vunpack.c.h.b16 %v172
  %v634 = vunpack.c.l.b16 %v173
  %v635 = vunpack.c.h.b16 %v173
  %v636 = vunpack.c.l.b16 %v174
  %v637 = vunpack.c.h.b16 %v174
  %v638 = vunpack.c.l.b16 %v175
  %v639 = vunpack.c.h.b16 %v175
  %v640 = vpack.c.b16 %v392, %v384
  %v641 = vpack.c.b16 %v393, %v385
  %v642 = vpack.c.b16 %v394, %v386
  %v643 = vpack.c.b16 %v395, %v387
  %v644 = vpack.c.b16 %v396, %v388
  %v645 = vpack.c.b16 %v397, %v389
  %v646 = vpack.c.b16 %v398, %v390
  %v647 = vpack.c.b16 %v399, %v391
  %v648 = vpack.c.b16 %v408, %v400
  %v649 = vpack.c.b16 %v409, %v401
  %v650 = vpack.c.b16 %v410, %v402
  %v651 = vpack.c.b16 %v411, %v403
  %v652 = vpack.c.b16 %v412, %v404
  %v653 = vpack.c.b16 %v413, %v405
  %v654 = vpack.c.b16 %v414, %v406
  %v655 = vpack.c.b16 %v415, %v407
  %v656 = vpack.c.b16 %v424, %v416
  %v657 = vpack.c.b16 %v425, %v417
  %v658 = vpack.c.b16 %v426, %v418
  %v659 = vpack.c.b16 %v427, %v419
  %v660 = vpack.c.b16 %v428, %v420
  %v661 = vpack.c.b16 %v429, %v421
  %v662 = vpack.c.b16 %v430, %v422
  %v663 = vpack.c.b16 %v431, %v423
  %v664 = vpack.c.b16 %v440, %v432
  %v665 = vpack.c.b16 %v441, %v433
  %v666 = vpack.c.b16 %v442, %v434
  %v667 = vpack.c.b16 %v443, %v435
  %v668 = vpack.c.b16 %v444, %v436
  %v669 = vpack.c.b16 %v445, %v437
  %v670 = vpack.c.b16 %v446, %v438
  %v671 = vpack.c.b16 %v447, %v439
  %v672 = vpack.c.b16 %v456, %v448
  %v673 = vpack.c.b16 %v457, %v449
  %v674 = vpack.c.b16 %v458, %v450
  %v675 = vpack.c.b16 %v459, %v451
  %v676 = vpack.c.b16 %v460, %v452
  %v677 = vpack.c.b16 %v461, %v453
  %v678 = vpack.c.b16 %v462, %v454
  %v679 = vpack.c.b16 %v463, %v455
  %v680 = vpack.c.b16 %v472, %v464
  %v681 = vpack.c.b16 %v473, %v465
  %v682 = vpack.c.b16 %v474, %v466
  %v683 = vpack.c.b16 %v475, %v467
  %v684 = vpack.c.b16 %v476, %v468
  %v685 = vpack.c.b16 %v477, %v469
  %v686 = vpack.c.b16 %v478, %v470
  %v687 = vpack.c.b16 %v479, %v471
  %v688 = vpack.c.b16 %v488, %v480
  %v689 = vpack.c.b16 %v489, %v481
  %v690 = vpack.c.b16 %v490, %v482
  %v691 = vpack.c.b16 %v491, %v483
  %v692 = vpack.c.b16 %v492, %v484
  %v693 = vpack.c.b16 %v493, %v485
  %v694 = vpack.c.b16 %v494, %v486
  %v695 = vpack.c.b16 %v495, %v487
  %v696 = vpack.c.b16 %v504, %v496
  %v697 = vpack.c.b16 %v505, %v497
  %v698 = vpack.c.b16 %v506, %v498
  %v699 = vpack.c.b16 %v507, %v499
  %v700 = vpack.c.b16 %v508, %v500
  %v701 = vpack.c.b16 %v509, %v501
  %v702 = vpack.c.b16 %v510, %v502
  %v703 = vpack.c.b16 %v511, %v503
  %v704 = vpack.c.b16 %v520, %v512
  %v705 = vpack.c.b16 %v521, %v513
  %v706 = vpack.c.b16 %v522, %v514
  %v707 = vpack.c.b16 %v523, %v515
  %v708 = vpack.c.b16 %v524, %v516
  %v709 = vpack.c.b16 %v525, %v517
  %v710 = vpack.c.b16 %v526, %v518
  %v711 = vpack.c.b16 %v527, %v519
  %v712 = vpack.c.b16 %v536, %v528
  %v713 = vpack.c.b16 %v537, %v529
  %v714 = vpack.c.b16 %v538, %v530
  %v715 = vpack.c.b16 %v539, %v531
  %v716 = vpack.c.b16 %v540, %v532
  %v717 = vpack.c.b16 %v541, %v533
  %v718 = vpack.c.b16 %v542, %v534
  %v719 = vpack.c.b16 %v543, %v535
  %v720 = vpack.c.b16 %v552, %v544
  %v721 = vpack.c.b16 %v553, %v545
  %v722 = vpack.c.b16 %v554, %v546
  %v723 = vpack.c.b16 %v555, %v547
  %v724 = vpack.c.b16 %v556, %v548
  %v725 = vpack.c.b16 %v557, %v549
  %v726 = vpack.c.b16 %v558, %v550
  %v727 = vpack.c.b16 %v559, %v551
  %v728 = vpack.c.b16 %v568, %v560
  %v729 = vpack.c.b16 %v569, %v561
  %v730 = vpack.c.b16 %v570, %v562
  %v731 = vpack.c.b16 %v571, %v563
  %v732 = vpack.c.b16 %v572, %v564
  %v733 = vpack.c.b16 %v573, %v565
  %v734 = vpack.c.b16 %v574, %v566
  %v735 = vpack.c.b16 %v575, %v567
  %v736 = vpack.c.b16 %v584, %v576
  %v737 = vpack.c.b16 %v585, %v577
  %v738 = vpack.c.b16 %v586, %v578
  %v739 = vpack.c.b16 %v587, %v579
  %v740 = vpack.c.b16 %v588, %v580
  %v741 = vpack.c.b16 %v589, %v581
  %v742 = vpack.c.b16 %v590, %v582
  %v743 = vpack.c.b16 %v591, %v583
  %v744 = vpack.c.b16 %v600, %v592
  %v745 = vpack.c.b16 %v601, %v593
  %v746 = vpack.c.b16 %v602, %v594
  %v747 = vpack.c.b16 %v603, %v595
  %v748 = vpack.c.b16 %v604, %v596
  %v749 = vpack.c.b16 %v605, %v597
  %v750 = vpack.c.b16 %v606, %v598
  %v751 = vpack.c.b16 %v607, %v599
  %v752 = vpack.c.b16 %v616, %v608
  %v753 = vpack.c.b16 %v617, %v609
  %v754 = vpack.c.b16 %v618, %v610
  %v755 = vpack.c.b16 %v619, %v611
  %v756 = vpack.c.b16 %v620, %v612
  %v757 = vpack.c.b16 %v621, %v613
  %v758 = vpack.c.b16 %v622, %v614
  %v759 = vpack.c.b16 %v623, %v615
  %v760 = vpack.c.b16 %v632, %v624
  %v761 = vpack.c.b16 %v633, %v625
  %v762 = vpack.c.b16 %v634, %v626
  %v763 = vpack.c.b16 %v635, %v627
  %v764 = vpack.c.b16 %v636, %v628
  %v765 = vpack.c.b16 %v637, %v629
  %v766 = vpack.c.b16 %v638, %v630
  %v767 = vpack.c.b16 %v639, %v631
  %896 = vmatprep.subr.bf16.mxu0 %v641
  %897 = vmatpush1.bf16.msra.mxu0 %v640
  %898 = vmatprep.subr.bf16.mxu0 %v649
  %899 = vmatpush1.bf16.msra.mxu0 %v648
  %900 = vmatprep.subr.bf16.mxu0 %v657
  %901 = vmatpush1.bf16.msra.mxu0 %v656
  %902 = vmatprep.subr.bf16.mxu0 %v665
  %903 = vmatpush1.bf16.msra.mxu0 %v664
  %904 = vmatprep.subr.bf16.mxu0 %v673
  %905 = vmatpush1.bf16.msra.mxu0 %v672
  %906 = vmatprep.subr.bf16.mxu0 %v681
  %907 = vmatpush1.bf16.msra.mxu0 %v680
  %908 = vmatprep.subr.bf16.mxu0 %v689
  %909 = vmatpush1.bf16.msra.mxu0 %v688
  %910 = vmatprep.subr.bf16.mxu0 %v697
  %911 = vmatpush1.bf16.msra.mxu0 %v696
  %912 = vmatprep.subr.bf16.mxu0 %v705
  %913 = vmatpush1.bf16.msra.mxu0 %v704
  %914 = vmatprep.subr.bf16.mxu0 %v713
  %915 = vmatpush1.bf16.msra.mxu0 %v712
  %916 = vmatprep.subr.bf16.mxu0 %v721
  %917 = vmatpush1.bf16.msra.mxu0 %v720
  %918 = vmatprep.subr.bf16.mxu0 %v729
  %919 = vmatpush1.bf16.msra.mxu0 %v728
  %920 = vmatprep.subr.bf16.mxu0 %v737
  %921 = vmatpush1.bf16.msra.mxu0 %v736
  %922 = vmatprep.subr.bf16.mxu0 %v745
  %923 = vmatpush1.bf16.msra.mxu0 %v744
  %924 = vmatprep.subr.bf16.mxu0 %v753
  %925 = vmatpush1.bf16.msra.mxu0 %v752
  %926 = vmatprep.subr.bf16.mxu0 %v761
  %927 = vmatpush1.bf16.msra.mxu0 %v760
  %928 = vmatprep.mubr.bf16.mxu0 %v225
  %929 = vmatmul.mubr.bf16.gmra.mrb[0].mxu0 %v224
  %v930 = vpop.f32.mrb[0].mxu0
  %v931 = vadd.f32 0.0, %v930
  %v932 = vpop.f32.mrb[0].mxu0
  %v933 = vadd.f32 0.0, %v932
  %v934 = vpop.f32.mrb[0].mxu0
  %v935 = vadd.f32 0.0, %v934
  %v936 = vpop.f32.mrb[0].mxu0
  %v937 = vadd.f32 0.0, %v936
  %938 = vmatprep.mubr.bf16.mxu0 %v227
  %939 = vmatmul.mubr.bf16.gmra.mrb[0].mxu0 %v226
  %v940 = vpop.f32.mrb[0].mxu0
  %v941 = vadd.f32 0.0, %v940
  %v942 = vpop.f32.mrb[0].mxu0
  %v943 = vadd.f32 0.0, %v942
  %v944 = vpop.f32.mrb[0].mxu0
  %v945 = vadd.f32 0.0, %v944
  %v946 = vpop.f32.mrb[0].mxu0
  %v947 = vadd.f32 0.0, %v946
  %948 = vmatprep.mubr.bf16.mxu0 %v229
  %949 = vmatmul.mubr.bf16.gmra.mrb[0].mxu0 %v228
  %v950 = vpop.f32.mrb[0].mxu0
  %v951 = vadd.f32 0.0, %v950
  %v952 = vpop.f32.mrb[0].mxu0
  %v953 = vadd.f32 0.0, %v952
  %v954 = vpop.f32.mrb[0].mxu0
  %v955 = vadd.f32 0.0, %v954
  %v956 = vpop.f32.mrb[0].mxu0
  %v957 = vadd.f32 0.0, %v956
  %958 = vmatprep.mubr.bf16.mxu0 %v231
  %959 = vmatmul.mubr.bf16.gmra.mrb[0].mxu0 %v230
  %v960 = vpop.f32.mrb[0].mxu0
  %v961 = vadd.f32 0.0, %v960
  %v962 = vpop.f32.mrb[0].mxu0
  %v963 = vadd.f32 0.0, %v962
  %v964 = vpop.f32.mrb[0].mxu0
  %v965 = vadd.f32 0.0, %v964
  %v966 = vpop.f32.mrb[0].mxu0
  %v967 = vadd.f32 0.0, %v966
  %968 = vmatprep.mubr.bf16.mxu0 %v233
  %969 = vmatmul.mubr.bf16.gmra.mrb[0].mxu0 %v232
  %v970 = vpop.f32.mrb[0].mxu0
  %v971 = vadd.f32 0.0, %v970
  %v972 = vpop.f32.mrb[0].mxu0
  %v973 = vadd.f32 0.0, %v972
  %v974 = vpop.f32.mrb[0].mxu0
  %v975 = vadd.f32 0.0, %v974
  %v976 = vpop.f32.mrb[0].mxu0
  %v977 = vadd.f32 0.0, %v976
  %978 = vmatprep.mubr.bf16.mxu0 %v235
  %979 = vmatmul.mubr.bf16.gmra.mrb[0].mxu0 %v234
  %v980 = vpop.f32.mrb[0].mxu0
  %v981 = vadd.f32 0.0, %v980
  %v982 = vpop.f32.mrb[0].mxu0
  %v983 = vadd.f32 0.0, %v982
  %v984 = vpop.f32.mrb[0].mxu0
  %v985 = vadd.f32 0.0, %v984
  %v986 = vpop.f32.mrb[0].mxu0
  %v987 = vadd.f32 0.0, %v986
  %988 = vmatprep.mubr.bf16.mxu0 %v237
  %989 = vmatmul.mubr.bf16.gmra.mrb[0].mxu0 %v236
  %v990 = vpop.f32.mrb[0].mxu0
  %v991 = vadd.f32 0.0, %v990
  %v992 = vpop.f32.mrb[0].mxu0
  %v993 = vadd.f32 0.0, %v992
  %v994 = vpop.f32.mrb[0].mxu0
  %v995 = vadd.f32 0.0, %v994
  %v996 = vpop.f32.mrb[0].mxu0
  %v997 = vadd.f32 0.0, %v996
  %998 = vmatprep.mubr.bf16.mxu0 %v239
  %999 = vmatmul.mubr.bf16.gmra.mrb[0].mxu0 %v238
  %v1000 = vpop.f32.mrb[0].mxu0
  %v1001 = vadd.f32 0.0, %v1000
  %v1002 = vpop.f32.mrb[0].mxu0
  %v1003 = vadd.f32 0.0, %v1002
  %v1004 = vpop.f32.mrb[0].mxu0
  %v1005 = vadd.f32 0.0, %v1004
  %v1006 = vpop.f32.mrb[0].mxu0
  %v1007 = vadd.f32 0.0, %v1006
  %1008 = vdwg.mxu0
  %1009 = vmatprep.subr.bf16.mxu0 %v643
  %1010 = vmatpush1.bf16.msra.mxu0 %v642
  %1011 = vmatprep.subr.bf16.mxu0 %v651
  %1012 = vmatpush1.bf16.msra.mxu0 %v650
  %1013 = vmatprep.subr.bf16.mxu0 %v659
  %1014 = vmatpush1.bf16.msra.mxu0 %v658
  %1015 = vmatprep.subr.bf16.mxu0 %v667
  %1016 = vmatpush1.bf16.msra.mxu0 %v666
  %1017 = vmatprep.subr.bf16.mxu0 %v675
  %1018 = vmatpush1.bf16.msra.mxu0 %v674
  %1019 = vmatprep.subr.bf16.mxu0 %v683
  %1020 = vmatpush1.bf16.msra.mxu0 %v682
  %1021 = vmatprep.subr.bf16.mxu0 %v691
  %1022 = vmatpush1.bf16.msra.mxu0 %v690
  %1023 = vmatprep.subr.bf16.mxu0 %v699
  %1024 = vmatpush1.bf16.msra.mxu0 %v698
  %1025 = vmatprep.subr.bf16.mxu0 %v707
  %1026 = vmatpush1.bf16.msra.mxu0 %v706
  %1027 = vmatprep.subr.bf16.mxu0 %v715
  %1028 = vmatpush1.bf16.msra.mxu0 %v714
  %1029 = vmatprep.subr.bf16.mxu0 %v723
  %1030 = vmatpush1.bf16.msra.mxu0 %v722
  %1031 = vmatprep.subr.bf16.mxu0 %v731
  %1032 = vmatpush1.bf16.msra.mxu0 %v730
  %1033 = vmatprep.subr.bf16.mxu0 %v739
  %1034 = vmatpush1.bf16.msra.mxu0 %v738
  %1035 = vmatprep.subr.bf16.mxu0 %v747
  %1036 = vmatpush1.bf16.msra.mxu0 %v746
  %1037 = vmatprep.subr.bf16.mxu0 %v755
  %1038 = vmatpush1.bf16.msra.mxu0 %v754
  %1039 = vmatprep.subr.bf16.mxu0 %v763
  %1040 = vmatpush1.bf16.msra.mxu0 %v762
  %1041 = vmatprep.mubr.bf16.mxu0 %v225
  %1042 = vmatmul.mubr.bf16.gmra.mrb[0].mxu0 %v224
  %v1043 = vpop.f32.mrb[0].mxu0
  %v1044 = vadd.f32 0.0, %v1043
  %v1045 = vpop.f32.mrb[0].mxu0
  %v1046 = vadd.f32 0.0, %v1045
  %v1047 = vpop.f32.mrb[0].mxu0
  %v1048 = vadd.f32 0.0, %v1047
  %v1049 = vpop.f32.mrb[0].mxu0
  %v1050 = vadd.f32 0.0, %v1049
  %1051 = vmatprep.mubr.bf16.mxu0 %v227
  %1052 = vmatmul.mubr.bf16.gmra.mrb[0].mxu0 %v226
  %v1053 = vpop.f32.mrb[0].mxu0
  %v1054 = vadd.f32 0.0, %v1053
  %v1055 = vpop.f32.mrb[0].mxu0
  %v1056 = vadd.f32 0.0, %v1055
  %v1057 = vpop.f32.mrb[0].mxu0
  %v1058 = vadd.f32 0.0, %v1057
  %v1059 = vpop.f32.mrb[0].mxu0
  %v1060 = vadd.f32 0.0, %v1059
  %1061 = vmatprep.mubr.bf16.mxu0 %v229
  %1062 = vmatmul.mubr.bf16.gmra.mrb[0].mxu0 %v228
  %v1063 = vpop.f32.mrb[0].mxu0
  %v1064 = vadd.f32 0.0, %v1063
  %v1065 = vpop.f32.mrb[0].mxu0
  %v1066 = vadd.f32 0.0, %v1065
  %v1067 = vpop.f32.mrb[0].mxu0
  %v1068 = vadd.f32 0.0, %v1067
  %v1069 = vpop.f32.mrb[0].mxu0
  %v1070 = vadd.f32 0.0, %v1069
  %1071 = vmatprep.mubr.bf16.mxu0 %v231
  %1072 = vmatmul.mubr.bf16.gmra.mrb[0].mxu0 %v230
  %v1073 = vpop.f32.mrb[0].mxu0
  %v1074 = vadd.f32 0.0, %v1073
  %v1075 = vpop.f32.mrb[0].mxu0
  %v1076 = vadd.f32 0.0, %v1075
  %v1077 = vpop.f32.mrb[0].mxu0
  %v1078 = vadd.f32 0.0, %v1077
  %v1079 = vpop.f32.mrb[0].mxu0
  %v1080 = vadd.f32 0.0, %v1079
  %1081 = vmatprep.mubr.bf16.mxu0 %v233
  %1082 = vmatmul.mubr.bf16.gmra.mrb[0].mxu0 %v232
  %v1083 = vpop.f32.mrb[0].mxu0
  %v1084 = vadd.f32 0.0, %v1083
  %v1085 = vpop.f32.mrb[0].mxu0
  %v1086 = vadd.f32 0.0, %v1085
  %v1087 = vpop.f32.mrb[0].mxu0
  %v1088 = vadd.f32 0.0, %v1087
  %v1089 = vpop.f32.mrb[0].mxu0
  %v1090 = vadd.f32 0.0, %v1089
  %1091 = vmatprep.mubr.bf16.mxu0 %v235
  %1092 = vmatmul.mubr.bf16.gmra.mrb[0].mxu0 %v234
  %v1093 = vpop.f32.mrb[0].mxu0
  %v1094 = vadd.f32 0.0, %v1093
  %v1095 = vpop.f32.mrb[0].mxu0
  %v1096 = vadd.f32 0.0, %v1095
  %v1097 = vpop.f32.mrb[0].mxu0
  %v1098 = vadd.f32 0.0, %v1097
  %v1099 = vpop.f32.mrb[0].mxu0
  %v1100 = vadd.f32 0.0, %v1099
  %1101 = vmatprep.mubr.bf16.mxu0 %v237
  %1102 = vmatmul.mubr.bf16.gmra.mrb[0].mxu0 %v236
  %v1103 = vpop.f32.mrb[0].mxu0
  %v1104 = vadd.f32 0.0, %v1103
  %v1105 = vpop.f32.mrb[0].mxu0
  %v1106 = vadd.f32 0.0, %v1105
  %v1107 = vpop.f32.mrb[0].mxu0
  %v1108 = vadd.f32 0.0, %v1107
  %v1109 = vpop.f32.mrb[0].mxu0
  %v1110 = vadd.f32 0.0, %v1109
  %1111 = vmatprep.mubr.bf16.mxu0 %v239
  %1112 = vmatmul.mubr.bf16.gmra.mrb[0].mxu0 %v238
  %v1113 = vpop.f32.mrb[0].mxu0
  %v1114 = vadd.f32 0.0, %v1113
  %v1115 = vpop.f32.mrb[0].mxu0
  %v1116 = vadd.f32 0.0, %v1115
  %v1117 = vpop.f32.mrb[0].mxu0
  %v1118 = vadd.f32 0.0, %v1117
  %v1119 = vpop.f32.mrb[0].mxu0
  %v1120 = vadd.f32 0.0, %v1119
  %1121 = vdwg.mxu0
  %1122 = vmatprep.subr.bf16.mxu0 %v645
  %1123 = vmatpush1.bf16.msra.mxu0 %v644
  %1124 = vmatprep.subr.bf16.mxu0 %v653
  %1125 = vmatpush1.bf16.msra.mxu0 %v652
  %1126 = vmatprep.subr.bf16.mxu0 %v661
  %1127 = vmatpush1.bf16.msra.mxu0 %v660
  %1128 = vmatprep.subr.bf16.mxu0 %v669
  %1129 = vmatpush1.bf16.msra.mxu0 %v668
  %1130 = vmatprep.subr.bf16.mxu0 %v677
  %1131 = vmatpush1.bf16.msra.mxu0 %v676
  %1132 = vmatprep.subr.bf16.mxu0 %v685
  %1133 = vmatpush1.bf16.msra.mxu0 %v684
  %1134 = vmatprep.subr.bf16.mxu0 %v693
  %1135 = vmatpush1.bf16.msra.mxu0 %v692
  %1136 = vmatprep.subr.bf16.mxu0 %v701
  %1137 = vmatpush1.bf16.msra.mxu0 %v700
  %1138 = vmatprep.subr.bf16.mxu0 %v709
  %1139 = vmatpush1.bf16.msra.mxu0 %v708
  %1140 = vmatprep.subr.bf16.mxu0 %v717
  %1141 = vmatpush1.bf16.msra.mxu0 %v716
  %1142 = vmatprep.subr.bf16.mxu0 %v725
  %1143 = vmatpush1.bf16.msra.mxu0 %v724
  %1144 = vmatprep.subr.bf16.mxu0 %v733
  %1145 = vmatpush1.bf16.msra.mxu0 %v732
  %1146 = vmatprep.subr.bf16.mxu0 %v741
  %1147 = vmatpush1.bf16.msra.mxu0 %v740
  %1148 = vmatprep.subr.bf16.mxu0 %v749
  %1149 = vmatpush1.bf16.msra.mxu0 %v748
  %1150 = vmatprep.subr.bf16.mxu0 %v757
  %1151 = vmatpush1.bf16.msra.mxu0 %v756
  %1152 = vmatprep.subr.bf16.mxu0 %v765
  %1153 = vmatpush1.bf16.msra.mxu0 %v764
  %1154 = vmatprep.mubr.bf16.mxu0 %v225
  %1155 = vmatmul.mubr.bf16.gmra.mrb[0].mxu0 %v224
  %v1156 = vpop.f32.mrb[0].mxu0
  %v1157 = vadd.f32 0.0, %v1156
  %v1158 = vpop.f32.mrb[0].mxu0
  %v1159 = vadd.f32 0.0, %v1158
  %v1160 = vpop.f32.mrb[0].mxu0
  %v1161 = vadd.f32 0.0, %v1160
  %v1162 = vpop.f32.mrb[0].mxu0
  %v1163 = vadd.f32 0.0, %v1162
  %1164 = vmatprep.mubr.bf16.mxu0 %v227
  %1165 = vmatmul.mubr.bf16.gmra.mrb[0].mxu0 %v226
  %v1166 = vpop.f32.mrb[0].mxu0
  %v1167 = vadd.f32 0.0, %v1166
  %v1168 = vpop.f32.mrb[0].mxu0
  %v1169 = vadd.f32 0.0, %v1168
  %v1170 = vpop.f32.mrb[0].mxu0
  %v1171 = vadd.f32 0.0, %v1170
  %v1172 = vpop.f32.mrb[0].mxu0
  %v1173 = vadd.f32 0.0, %v1172
  %1174 = vmatprep.mubr.bf16.mxu0 %v229
  %1175 = vmatmul.mubr.bf16.gmra.mrb[0].mxu0 %v228
  %v1176 = vpop.f32.mrb[0].mxu0
  %v1177 = vadd.f32 0.0, %v1176
  %v1178 = vpop.f32.mrb[0].mxu0
  %v1179 = vadd.f32 0.0, %v1178
  %v1180 = vpop.f32.mrb[0].mxu0
  %v1181 = vadd.f32 0.0, %v1180
  %v1182 = vpop.f32.mrb[0].mxu0
  %v1183 = vadd.f32 0.0, %v1182
  %1184 = vmatprep.mubr.bf16.mxu0 %v231
  %1185 = vmatmul.mubr.bf16.gmra.mrb[0].mxu0 %v230
  %v1186 = vpop.f32.mrb[0].mxu0
  %v1187 = vadd.f32 0.0, %v1186
  %v1188 = vpop.f32.mrb[0].mxu0
  %v1189 = vadd.f32 0.0, %v1188
  %v1190 = vpop.f32.mrb[0].mxu0
  %v1191 = vadd.f32 0.0, %v1190
  %v1192 = vpop.f32.mrb[0].mxu0
  %v1193 = vadd.f32 0.0, %v1192
  %1194 = vmatprep.mubr.bf16.mxu0 %v233
  %1195 = vmatmul.mubr.bf16.gmra.mrb[0].mxu0 %v232
  %v1196 = vpop.f32.mrb[0].mxu0
  %v1197 = vadd.f32 0.0, %v1196
  %v1198 = vpop.f32.mrb[0].mxu0
  %v1199 = vadd.f32 0.0, %v1198
  %v1200 = vpop.f32.mrb[0].mxu0
  %v1201 = vadd.f32 0.0, %v1200
  %v1202 = vpop.f32.mrb[0].mxu0
  %v1203 = vadd.f32 0.0, %v1202
  %1204 = vmatprep.mubr.bf16.mxu0 %v235
  %1205 = vmatmul.mubr.bf16.gmra.mrb[0].mxu0 %v234
  %v1206 = vpop.f32.mrb[0].mxu0
  %v1207 = vadd.f32 0.0, %v1206
  %v1208 = vpop.f32.mrb[0].mxu0
  %v1209 = vadd.f32 0.0, %v1208
  %v1210 = vpop.f32.mrb[0].mxu0
  %v1211 = vadd.f32 0.0, %v1210
  %v1212 = vpop.f32.mrb[0].mxu0
  %v1213 = vadd.f32 0.0, %v1212
  %1214 = vmatprep.mubr.bf16.mxu0 %v237
  %1215 = vmatmul.mubr.bf16.gmra.mrb[0].mxu0 %v236
  %v1216 = vpop.f32.mrb[0].mxu0
  %v1217 = vadd.f32 0.0, %v1216
  %v1218 = vpop.f32.mrb[0].mxu0
  %v1219 = vadd.f32 0.0, %v1218
  %v1220 = vpop.f32.mrb[0].mxu0
  %v1221 = vadd.f32 0.0, %v1220
  %v1222 = vpop.f32.mrb[0].mxu0
  %v1223 = vadd.f32 0.0, %v1222
  %1224 = vmatprep.mubr.bf16.mxu0 %v239
  %1225 = vmatmul.mubr.bf16.gmra.mrb[0].mxu0 %v238
  %v1226 = vpop.f32.mrb[0].mxu0
  %v1227 = vadd.f32 0.0, %v1226
  %v1228 = vpop.f32.mrb[0].mxu0
  %v1229 = vadd.f32 0.0, %v1228
  %v1230 = vpop.f32.mrb[0].mxu0
  %v1231 = vadd.f32 0.0, %v1230
  %v1232 = vpop.f32.mrb[0].mxu0
  %v1233 = vadd.f32 0.0, %v1232
  %1234 = vdwg.mxu0
  %1235 = vmatprep.subr.bf16.mxu0 %v647
  %1236 = vmatpush1.bf16.msra.mxu0 %v646
  %1237 = vmatprep.subr.bf16.mxu0 %v655
  %1238 = vmatpush1.bf16.msra.mxu0 %v654
  %1239 = vmatprep.subr.bf16.mxu0 %v663
  %1240 = vmatpush1.bf16.msra.mxu0 %v662
  %1241 = vmatprep.subr.bf16.mxu0 %v671
  %1242 = vmatpush1.bf16.msra.mxu0 %v670
  %1243 = vmatprep.subr.bf16.mxu0 %v679
  %1244 = vmatpush1.bf16.msra.mxu0 %v678
  %1245 = vmatprep.subr.bf16.mxu0 %v687
  %1246 = vmatpush1.bf16.msra.mxu0 %v686
  %1247 = vmatprep.subr.bf16.mxu0 %v695
  %1248 = vmatpush1.bf16.msra.mxu0 %v694
  %1249 = vmatprep.subr.bf16.mxu0 %v703
  %1250 = vmatpush1.bf16.msra.mxu0 %v702
  %1251 = vmatprep.subr.bf16.mxu0 %v711
  %1252 = vmatpush1.bf16.msra.mxu0 %v710
  %1253 = vmatprep.subr.bf16.mxu0 %v719
  %1254 = vmatpush1.bf16.msra.mxu0 %v718
  %1255 = vmatprep.subr.bf16.mxu0 %v727
  %1256 = vmatpush1.bf16.msra.mxu0 %v726
  %1257 = vmatprep.subr.bf16.mxu0 %v735
  %1258 = vmatpush1.bf16.msra.mxu0 %v734
  %1259 = vmatprep.subr.bf16.mxu0 %v743
  %1260 = vmatpush1.bf16.msra.mxu0 %v742
  %1261 = vmatprep.subr.bf16.mxu0 %v751
  %1262 = vmatpush1.bf16.msra.mxu0 %v750
  %1263 = vmatprep.subr.bf16.mxu0 %v759
  %1264 = vmatpush1.bf16.msra.mxu0 %v758
  %1265 = vmatprep.subr.bf16.mxu0 %v767
  %1266 = vmatpush1.bf16.msra.mxu0 %v766
  %1267 = vmatprep.mubr.bf16.mxu0 %v225
  %1268 = vmatmul.mubr.bf16.gmra.mrb[0].mxu0 %v224
  %v1269 = vpop.f32.mrb[0].mxu0
  %v1270 = vadd.f32 0.0, %v1269
  %v1271 = vpop.f32.mrb[0].mxu0
  %v1272 = vadd.f32 0.0, %v1271
  %v1273 = vpop.f32.mrb[0].mxu0
  %v1274 = vadd.f32 0.0, %v1273
  %v1275 = vpop.f32.mrb[0].mxu0
  %v1276 = vadd.f32 0.0, %v1275
  %1277 = vmatprep.mubr.bf16.mxu0 %v227
  %1278 = vmatmul.mubr.bf16.gmra.mrb[0].mxu0 %v226
  %v1279 = vpop.f32.mrb[0].mxu0
  %v1280 = vadd.f32 0.0, %v1279
  %v1281 = vpop.f32.mrb[0].mxu0
  %v1282 = vadd.f32 0.0, %v1281
  %v1283 = vpop.f32.mrb[0].mxu0
  %v1284 = vadd.f32 0.0, %v1283
  %v1285 = vpop.f32.mrb[0].mxu0
  %v1286 = vadd.f32 0.0, %v1285
  %1287 = vmatprep.mubr.bf16.mxu0 %v229
  %1288 = vmatmul.mubr.bf16.gmra.mrb[0].mxu0 %v228
  %v1289 = vpop.f32.mrb[0].mxu0
  %v1290 = vadd.f32 0.0, %v1289
  %v1291 = vpop.f32.mrb[0].mxu0
  %v1292 = vadd.f32 0.0, %v1291
  %v1293 = vpop.f32.mrb[0].mxu0
  %v1294 = vadd.f32 0.0, %v1293
  %v1295 = vpop.f32.mrb[0].mxu0
  %v1296 = vadd.f32 0.0, %v1295
  %1297 = vmatprep.mubr.bf16.mxu0 %v231
  %1298 = vmatmul.mubr.bf16.gmra.mrb[0].mxu0 %v230
  %v1299 = vpop.f32.mrb[0].mxu0
  %v1300 = vadd.f32 0.0, %v1299
  %v1301 = vpop.f32.mrb[0].mxu0
  %v1302 = vadd.f32 0.0, %v1301
  %v1303 = vpop.f32.mrb[0].mxu0
  %v1304 = vadd.f32 0.0, %v1303
  %v1305 = vpop.f32.mrb[0].mxu0
  %v1306 = vadd.f32 0.0, %v1305
  %1307 = vmatprep.mubr.bf16.mxu0 %v233
  %1308 = vmatmul.mubr.bf16.gmra.mrb[0].mxu0 %v232
  %v1309 = vpop.f32.mrb[0].mxu0
  %v1310 = vadd.f32 0.0, %v1309
  %v1311 = vpop.f32.mrb[0].mxu0
  %v1312 = vadd.f32 0.0, %v1311
  %v1313 = vpop.f32.mrb[0].mxu0
  %v1314 = vadd.f32 0.0, %v1313
  %v1315 = vpop.f32.mrb[0].mxu0
  %v1316 = vadd.f32 0.0, %v1315
  %1317 = vmatprep.mubr.bf16.mxu0 %v235
  %1318 = vmatmul.mubr.bf16.gmra.mrb[0].mxu0 %v234
  %v1319 = vpop.f32.mrb[0].mxu0
  %v1320 = vadd.f32 0.0, %v1319
  %v1321 = vpop.f32.mrb[0].mxu0
  %v1322 = vadd.f32 0.0, %v1321
  %v1323 = vpop.f32.mrb[0].mxu0
  %v1324 = vadd.f32 0.0, %v1323
  %v1325 = vpop.f32.mrb[0].mxu0
  %v1326 = vadd.f32 0.0, %v1325
  %1327 = vmatprep.mubr.bf16.mxu0 %v237
  %1328 = vmatmul.mubr.bf16.gmra.mrb[0].mxu0 %v236
  %v1329 = vpop.f32.mrb[0].mxu0
  %v1330 = vadd.f32 0.0, %v1329
  %v1331 = vpop.f32.mrb[0].mxu0
  %v1332 = vadd.f32 0.0, %v1331
  %v1333 = vpop.f32.mrb[0].mxu0
  %v1334 = vadd.f32 0.0, %v1333
  %v1335 = vpop.f32.mrb[0].mxu0
  %v1336 = vadd.f32 0.0, %v1335
  %1337 = vmatprep.mubr.bf16.mxu0 %v239
  %1338 = vmatmul.mubr.bf16.gmra.mrb[0].mxu0 %v238
  %v1339 = vpop.f32.mrb[0].mxu0
  %v1340 = vadd.f32 0.0, %v1339
  %v1341 = vpop.f32.mrb[0].mxu0
  %v1342 = vadd.f32 0.0, %v1341
  %v1343 = vpop.f32.mrb[0].mxu0
  %v1344 = vadd.f32 0.0, %v1343
  %v1345 = vpop.f32.mrb[0].mxu0
  %v1346 = vadd.f32 0.0, %v1345
  %1347 = vdwg.mxu0
  %vm1348 = vcmp.gt.f32.partialorder %v931, 0.0
  %vm1349 = vcmp.gt.f32.partialorder %v933, 0.0
  %vm1350 = vcmp.gt.f32.partialorder %v1044, 0.0
  %vm1351 = vcmp.gt.f32.partialorder %v1046, 0.0
  %vm1352 = vcmp.gt.f32.partialorder %v1157, 0.0
  %vm1353 = vcmp.gt.f32.partialorder %v1159, 0.0
  %vm1354 = vcmp.gt.f32.partialorder %v1270, 0.0
  %vm1355 = vcmp.gt.f32.partialorder %v1272, 0.0
  %vm1356 = vcmp.gt.f32.partialorder %v935, 0.0
  %vm1357 = vcmp.gt.f32.partialorder %v937, 0.0
  %vm1358 = vcmp.gt.f32.partialorder %v1048, 0.0
  %vm1359 = vcmp.gt.f32.partialorder %v1050, 0.0
  %vm1360 = vcmp.gt.f32.partialorder %v1161, 0.0
  %vm1361 = vcmp.gt.f32.partialorder %v1163, 0.0
  %vm1362 = vcmp.gt.f32.partialorder %v1274, 0.0
  %vm1363 = vcmp.gt.f32.partialorder %v1276, 0.0
  %vm1364 = vcmp.gt.f32.partialorder %v941, 0.0
  %vm1365 = vcmp.gt.f32.partialorder %v943, 0.0
  %vm1366 = vcmp.gt.f32.partialorder %v1054, 0.0
  %vm1367 = vcmp.gt.f32.partialorder %v1056, 0.0
  %vm1368 = vcmp.gt.f32.partialorder %v1167, 0.0
  %vm1369 = vcmp.gt.f32.partialorder %v1169, 0.0
  %vm1370 = vcmp.gt.f32.partialorder %v1280, 0.0
  %vm1371 = vcmp.gt.f32.partialorder %v1282, 0.0
  %vm1372 = vcmp.gt.f32.partialorder %v945, 0.0
  %vm1373 = vcmp.gt.f32.partialorder %v947, 0.0
  %vm1374 = vcmp.gt.f32.partialorder %v1058, 0.0
  %vm1375 = vcmp.gt.f32.partialorder %v1060, 0.0
  %vm1376 = vcmp.gt.f32.partialorder %v1171, 0.0
  %vm1377 = vcmp.gt.f32.partialorder %v1173, 0.0
  %vm1378 = vcmp.gt.f32.partialorder %v1284, 0.0
  %vm1379 = vcmp.gt.f32.partialorder %v1286, 0.0
  %vm1380 = vcmp.gt.f32.partialorder %v951, 0.0
  %vm1381 = vcmp.gt.f32.partialorder %v953, 0.0
  %vm1382 = vcmp.gt.f32.partialorder %v1064, 0.0
  %vm1383 = vcmp.gt.f32.partialorder %v1066, 0.0
  %vm1384 = vcmp.gt.f32.partialorder %v1177, 0.0
  %vm1385 = vcmp.gt.f32.partialorder %v1179, 0.0
  %vm1386 = vcmp.gt.f32.partialorder %v1290, 0.0
  %vm1387 = vcmp.gt.f32.partialorder %v1292, 0.0
  %vm1388 = vcmp.gt.f32.partialorder %v955, 0.0
  %vm1389 = vcmp.gt.f32.partialorder %v957, 0.0
  %vm1390 = vcmp.gt.f32.partialorder %v1068, 0.0
  %vm1391 = vcmp.gt.f32.partialorder %v1070, 0.0
  %vm1392 = vcmp.gt.f32.partialorder %v1181, 0.0
  %vm1393 = vcmp.gt.f32.partialorder %v1183, 0.0
  %vm1394 = vcmp.gt.f32.partialorder %v1294, 0.0
  %vm1395 = vcmp.gt.f32.partialorder %v1296, 0.0
  %vm1396 = vcmp.gt.f32.partialorder %v961, 0.0
  %vm1397 = vcmp.gt.f32.partialorder %v963, 0.0
  %vm1398 = vcmp.gt.f32.partialorder %v1074, 0.0
  %vm1399 = vcmp.gt.f32.partialorder %v1076, 0.0
  %vm1400 = vcmp.gt.f32.partialorder %v1187, 0.0
  %vm1401 = vcmp.gt.f32.partialorder %v1189, 0.0
  %vm1402 = vcmp.gt.f32.partialorder %v1300, 0.0
  %vm1403 = vcmp.gt.f32.partialorder %v1302, 0.0
  %vm1404 = vcmp.gt.f32.partialorder %v965, 0.0
  %vm1405 = vcmp.gt.f32.partialorder %v967, 0.0
  %vm1406 = vcmp.gt.f32.partialorder %v1078, 0.0
  %vm1407 = vcmp.gt.f32.partialorder %v1080, 0.0
  %vm1408 = vcmp.gt.f32.partialorder %v1191, 0.0
  %vm1409 = vcmp.gt.f32.partialorder %v1193, 0.0
  %vm1410 = vcmp.gt.f32.partialorder %v1304, 0.0
  %vm1411 = vcmp.gt.f32.partialorder %v1306, 0.0
  %vm1412 = vcmp.gt.f32.partialorder %v971, 0.0
  %vm1413 = vcmp.gt.f32.partialorder %v973, 0.0
  %vm1414 = vcmp.gt.f32.partialorder %v1084, 0.0
  %vm1415 = vcmp.gt.f32.partialorder %v1086, 0.0
  %vm1416 = vcmp.gt.f32.partialorder %v1197, 0.0
  %vm1417 = vcmp.gt.f32.partialorder %v1199, 0.0
  %vm1418 = vcmp.gt.f32.partialorder %v1310, 0.0
  %vm1419 = vcmp.gt.f32.partialorder %v1312, 0.0
  %vm1420 = vcmp.gt.f32.partialorder %v975, 0.0
  %vm1421 = vcmp.gt.f32.partialorder %v977, 0.0
  %vm1422 = vcmp.gt.f32.partialorder %v1088, 0.0
  %vm1423 = vcmp.gt.f32.partialorder %v1090, 0.0
  %vm1424 = vcmp.gt.f32.partialorder %v1201, 0.0
  %vm1425 = vcmp.gt.f32.partialorder %v1203, 0.0
  %vm1426 = vcmp.gt.f32.partialorder %v1314, 0.0
  %vm1427 = vcmp.gt.f32.partialorder %v1316, 0.0
  %vm1428 = vcmp.gt.f32.partialorder %v981, 0.0
  %vm1429 = vcmp.gt.f32.partialorder %v983, 0.0
  %vm1430 = vcmp.gt.f32.partialorder %v1094, 0.0
  %vm1431 = vcmp.gt.f32.partialorder %v1096, 0.0
  %vm1432 = vcmp.gt.f32.partialorder %v1207, 0.0
  %vm1433 = vcmp.gt.f32.partialorder %v1209, 0.0
  %vm1434 = vcmp.gt.f32.partialorder %v1320, 0.0
  %vm1435 = vcmp.gt.f32.partialorder %v1322, 0.0
  %vm1436 = vcmp.gt.f32.partialorder %v985, 0.0
  %vm1437 = vcmp.gt.f32.partialorder %v987, 0.0
  %vm1438 = vcmp.gt.f32.partialorder %v1098, 0.0
  %vm1439 = vcmp.gt.f32.partialorder %v1100, 0.0
  %vm1440 = vcmp.gt.f32.partialorder %v1211, 0.0
  %vm1441 = vcmp.gt.f32.partialorder %v1213, 0.0
  %vm1442 = vcmp.gt.f32.partialorder %v1324, 0.0
  %vm1443 = vcmp.gt.f32.partialorder %v1326, 0.0
  %vm1444 = vcmp.gt.f32.partialorder %v991, 0.0
  %vm1445 = vcmp.gt.f32.partialorder %v993, 0.0
  %vm1446 = vcmp.gt.f32.partialorder %v1104, 0.0
  %vm1447 = vcmp.gt.f32.partialorder %v1106, 0.0
  %vm1448 = vcmp.gt.f32.partialorder %v1217, 0.0
  %vm1449 = vcmp.gt.f32.partialorder %v1219, 0.0
  %vm1450 = vcmp.gt.f32.partialorder %v1330, 0.0
  %vm1451 = vcmp.gt.f32.partialorder %v1332, 0.0
  %vm1452 = vcmp.gt.f32.partialorder %v995, 0.0
  %vm1453 = vcmp.gt.f32.partialorder %v997, 0.0
  %vm1454 = vcmp.gt.f32.partialorder %v1108, 0.0
  %vm1455 = vcmp.gt.f32.partialorder %v1110, 0.0
  %vm1456 = vcmp.gt.f32.partialorder %v1221, 0.0
  %vm1457 = vcmp.gt.f32.partialorder %v1223, 0.0
  %vm1458 = vcmp.gt.f32.partialorder %v1334, 0.0
  %vm1459 = vcmp.gt.f32.partialorder %v1336, 0.0
  %vm1460 = vcmp.gt.f32.partialorder %v1001, 0.0
  %vm1461 = vcmp.gt.f32.partialorder %v1003, 0.0
  %vm1462 = vcmp.gt.f32.partialorder %v1114, 0.0
  %vm1463 = vcmp.gt.f32.partialorder %v1116, 0.0
  %vm1464 = vcmp.gt.f32.partialorder %v1227, 0.0
  %vm1465 = vcmp.gt.f32.partialorder %v1229, 0.0
  %vm1466 = vcmp.gt.f32.partialorder %v1340, 0.0
  %vm1467 = vcmp.gt.f32.partialorder %v1342, 0.0
  %vm1468 = vcmp.gt.f32.partialorder %v1005, 0.0
  %vm1469 = vcmp.gt.f32.partialorder %v1007, 0.0
  %vm1470 = vcmp.gt.f32.partialorder %v1118, 0.0
  %vm1471 = vcmp.gt.f32.partialorder %v1120, 0.0
  %vm1472 = vcmp.gt.f32.partialorder %v1231, 0.0
  %vm1473 = vcmp.gt.f32.partialorder %v1233, 0.0
  %vm1474 = vcmp.gt.f32.partialorder %v1344, 0.0
  %vm1475 = vcmp.gt.f32.partialorder %v1346, 0.0
  %v1476 = vmul.f32 %v931, 0.2
  %v1477 = vmul.f32 %v933, 0.2
  %v1478 = vmul.f32 %v1044, 0.2
  %v1479 = vmul.f32 %v1046, 0.2
  %v1480 = vmul.f32 %v1157, 0.2
  %v1481 = vmul.f32 %v1159, 0.2
  %v1482 = vmul.f32 %v1270, 0.2
  %v1483 = vmul.f32 %v1272, 0.2
  %v1484 = vmul.f32 %v935, 0.2
  %v1485 = vmul.f32 %v937, 0.2
  %v1486 = vmul.f32 %v1048, 0.2
  %v1487 = vmul.f32 %v1050, 0.2
  %v1488 = vmul.f32 %v1161, 0.2
  %v1489 = vmul.f32 %v1163, 0.2
  %v1490 = vmul.f32 %v1274, 0.2
  %v1491 = vmul.f32 %v1276, 0.2
  %v1492 = vmul.f32 %v941, 0.2
  %v1493 = vmul.f32 %v943, 0.2
  %v1494 = vmul.f32 %v1054, 0.2
  %v1495 = vmul.f32 %v1056, 0.2
  %v1496 = vmul.f32 %v1167, 0.2
  %v1497 = vmul.f32 %v1169, 0.2
  %v1498 = vmul.f32 %v1280, 0.2
  %v1499 = vmul.f32 %v1282, 0.2
  %v1500 = vmul.f32 %v945, 0.2
  %v1501 = vmul.f32 %v947, 0.2
  %v1502 = vmul.f32 %v1058, 0.2
  %v1503 = vmul.f32 %v1060, 0.2
  %v1504 = vmul.f32 %v1171, 0.2
  %v1505 = vmul.f32 %v1173, 0.2
  %v1506 = vmul.f32 %v1284, 0.2
  %v1507 = vmul.f32 %v1286, 0.2
  %v1508 = vmul.f32 %v951, 0.2
  %v1509 = vmul.f32 %v953, 0.2
  %v1510 = vmul.f32 %v1064, 0.2
  %v1511 = vmul.f32 %v1066, 0.2
  %v1512 = vmul.f32 %v1177, 0.2
  %v1513 = vmul.f32 %v1179, 0.2
  %v1514 = vmul.f32 %v1290, 0.2
  %v1515 = vmul.f32 %v1292, 0.2
  %v1516 = vmul.f32 %v955, 0.2
  %v1517 = vmul.f32 %v957, 0.2
  %v1518 = vmul.f32 %v1068, 0.2
  %v1519 = vmul.f32 %v1070, 0.2
  %v1520 = vmul.f32 %v1181, 0.2
  %v1521 = vmul.f32 %v1183, 0.2
  %v1522 = vmul.f32 %v1294, 0.2
  %v1523 = vmul.f32 %v1296, 0.2
  %v1524 = vmul.f32 %v961, 0.2
  %v1525 = vmul.f32 %v963, 0.2
  %v1526 = vmul.f32 %v1074, 0.2
  %v1527 = vmul.f32 %v1076, 0.2
  %v1528 = vmul.f32 %v1187, 0.2
  %v1529 = vmul.f32 %v1189, 0.2
  %v1530 = vmul.f32 %v1300, 0.2
  %v1531 = vmul.f32 %v1302, 0.2
  %v1532 = vmul.f32 %v965, 0.2
  %v1533 = vmul.f32 %v967, 0.2
  %v1534 = vmul.f32 %v1078, 0.2
  %v1535 = vmul.f32 %v1080, 0.2
  %v1536 = vmul.f32 %v1191, 0.2
  %v1537 = vmul.f32 %v1193, 0.2
  %v1538 = vmul.f32 %v1304, 0.2
  %v1539 = vmul.f32 %v1306, 0.2
  %v1540 = vmul.f32 %v971, 0.2
  %v1541 = vmul.f32 %v973, 0.2
  %v1542 = vmul.f32 %v1084, 0.2
  %v1543 = vmul.f32 %v1086, 0.2
  %v1544 = vmul.f32 %v1197, 0.2
  %v1545 = vmul.f32 %v1199, 0.2
  %v1546 = vmul.f32 %v1310, 0.2
  %v1547 = vmul.f32 %v1312, 0.2
  %v1548 = vmul.f32 %v975, 0.2
  %v1549 = vmul.f32 %v977, 0.2
  %v1550 = vmul.f32 %v1088, 0.2
  %v1551 = vmul.f32 %v1090, 0.2
  %v1552 = vmul.f32 %v1201, 0.2
  %v1553 = vmul.f32 %v1203, 0.2
  %v1554 = vmul.f32 %v1314, 0.2
  %v1555 = vmul.f32 %v1316, 0.2
  %v1556 = vmul.f32 %v981, 0.2
  %v1557 = vmul.f32 %v983, 0.2
  %v1558 = vmul.f32 %v1094, 0.2
  %v1559 = vmul.f32 %v1096, 0.2
  %v1560 = vmul.f32 %v1207, 0.2
  %v1561 = vmul.f32 %v1209, 0.2
  %v1562 = vmul.f32 %v1320, 0.2
  %v1563 = vmul.f32 %v1322, 0.2
  %v1564 = vmul.f32 %v985, 0.2
  %v1565 = vmul.f32 %v987, 0.2
  %v1566 = vmul.f32 %v1098, 0.2
  %v1567 = vmul.f32 %v1100, 0.2
  %v1568 = vmul.f32 %v1211, 0.2
  %v1569 = vmul.f32 %v1213, 0.2
  %v1570 = vmul.f32 %v1324, 0.2
  %v1571 = vmul.f32 %v1326, 0.2
  %v1572 = vmul.f32 %v991, 0.2
  %v1573 = vmul.f32 %v993, 0.2
  %v1574 = vmul.f32 %v1104, 0.2
  %v1575 = vmul.f32 %v1106, 0.2
  %v1576 = vmul.f32 %v1217, 0.2
  %v1577 = vmul.f32 %v1219, 0.2
  %v1578 = vmul.f32 %v1330, 0.2
  %v1579 = vmul.f32 %v1332, 0.2
  %v1580 = vmul.f32 %v995, 0.2
  %v1581 = vmul.f32 %v997, 0.2
  %v1582 = vmul.f32 %v1108, 0.2
  %v1583 = vmul.f32 %v1110, 0.2
  %v1584 = vmul.f32 %v1221, 0.2
  %v1585 = vmul.f32 %v1223, 0.2
  %v1586 = vmul.f32 %v1334, 0.2
  %v1587 = vmul.f32 %v1336, 0.2
  %v1588 = vmul.f32 %v1001, 0.2
  %v1589 = vmul.f32 %v1003, 0.2
  %v1590 = vmul.f32 %v1114, 0.2
  %v1591 = vmul.f32 %v1116, 0.2
  %v1592 = vmul.f32 %v1227, 0.2
  %v1593 = vmul.f32 %v1229, 0.2
  %v1594 = vmul.f32 %v1340, 0.2
  %v1595 = vmul.f32 %v1342, 0.2
  %v1596 = vmul.f32 %v1005, 0.2
  %v1597 = vmul.f32 %v1007, 0.2
  %v1598 = vmul.f32 %v1118, 0.2
  %v1599 = vmul.f32 %v1120, 0.2
  %v1600 = vmul.f32 %v1231, 0.2
  %v1601 = vmul.f32 %v1233, 0.2
  %v1602 = vmul.f32 %v1344, 0.2
  %v1603 = vmul.f32 %v1346, 0.2
  %v1604 = vsel %vm1348, %v931, %v1476
  %v1605 = vsel %vm1349, %v933, %v1477
  %v1606 = vsel %vm1350, %v1044, %v1478
  %v1607 = vsel %vm1351, %v1046, %v1479
  %v1608 = vsel %vm1352, %v1157, %v1480
  %v1609 = vsel %vm1353, %v1159, %v1481
  %v1610 = vsel %vm1354, %v1270, %v1482
  %v1611 = vsel %vm1355, %v1272, %v1483
  %v1612 = vsel %vm1356, %v935, %v1484
  %v1613 = vsel %vm1357, %v937, %v1485
  %v1614 = vsel %vm1358, %v1048, %v1486
  %v1615 = vsel %vm1359, %v1050, %v1487
  %v1616 = vsel %vm1360, %v1161, %v1488
  %v1617 = vsel %vm1361, %v1163, %v1489
  %v1618 = vsel %vm1362, %v1274, %v1490
  %v1619 = vsel %vm1363, %v1276, %v1491
  %v1620 = vsel %vm1364, %v941, %v1492
  %v1621 = vsel %vm1365, %v943, %v1493
  %v1622 = vsel %vm1366, %v1054, %v1494
  %v1623 = vsel %vm1367, %v1056, %v1495
  %v1624 = vsel %vm1368, %v1167, %v1496
  %v1625 = vsel %vm1369, %v1169, %v1497
  %v1626 = vsel %vm1370, %v1280, %v1498
  %v1627 = vsel %vm1371, %v1282, %v1499
  %v1628 = vsel %vm1372, %v945, %v1500
  %v1629 = vsel %vm1373, %v947, %v1501
  %v1630 = vsel %vm1374, %v1058, %v1502
  %v1631 = vsel %vm1375, %v1060, %v1503
  %v1632 = vsel %vm1376, %v1171, %v1504
  %v1633 = vsel %vm1377, %v1173, %v1505
  %v1634 = vsel %vm1378, %v1284, %v1506
  %v1635 = vsel %vm1379, %v1286, %v1507
  %v1636 = vsel %vm1380, %v951, %v1508
  %v1637 = vsel %vm1381, %v953, %v1509
  %v1638 = vsel %vm1382, %v1064, %v1510
  %v1639 = vsel %vm1383, %v1066, %v1511
  %v1640 = vsel %vm1384, %v1177, %v1512
  %v1641 = vsel %vm1385, %v1179, %v1513
  %v1642 = vsel %vm1386, %v1290, %v1514
  %v1643 = vsel %vm1387, %v1292, %v1515
  %v1644 = vsel %vm1388, %v955, %v1516
  %v1645 = vsel %vm1389, %v957, %v1517
  %v1646 = vsel %vm1390, %v1068, %v1518
  %v1647 = vsel %vm1391, %v1070, %v1519
  %v1648 = vsel %vm1392, %v1181, %v1520
  %v1649 = vsel %vm1393, %v1183, %v1521
  %v1650 = vsel %vm1394, %v1294, %v1522
  %v1651 = vsel %vm1395, %v1296, %v1523
  %v1652 = vsel %vm1396, %v961, %v1524
  %v1653 = vsel %vm1397, %v963, %v1525
  %v1654 = vsel %vm1398, %v1074, %v1526
  %v1655 = vsel %vm1399, %v1076, %v1527
  %v1656 = vsel %vm1400, %v1187, %v1528
  %v1657 = vsel %vm1401, %v1189, %v1529
  %v1658 = vsel %vm1402, %v1300, %v1530
  %v1659 = vsel %vm1403, %v1302, %v1531
  %v1660 = vsel %vm1404, %v965, %v1532
  %v1661 = vsel %vm1405, %v967, %v1533
  %v1662 = vsel %vm1406, %v1078, %v1534
  %v1663 = vsel %vm1407, %v1080, %v1535
  %v1664 = vsel %vm1408, %v1191, %v1536
  %v1665 = vsel %vm1409, %v1193, %v1537
  %v1666 = vsel %vm1410, %v1304, %v1538
  %v1667 = vsel %vm1411, %v1306, %v1539
  %v1668 = vsel %vm1412, %v971, %v1540
  %v1669 = vsel %vm1413, %v973, %v1541
  %v1670 = vsel %vm1414, %v1084, %v1542
  %v1671 = vsel %vm1415, %v1086, %v1543
  %v1672 = vsel %vm1416, %v1197, %v1544
  %v1673 = vsel %vm1417, %v1199, %v1545
  %v1674 = vsel %vm1418, %v1310, %v1546
  %v1675 = vsel %vm1419, %v1312, %v1547
  %v1676 = vsel %vm1420, %v975, %v1548
  %v1677 = vsel %vm1421, %v977, %v1549
  %v1678 = vsel %vm1422, %v1088, %v1550
  %v1679 = vsel %vm1423, %v1090, %v1551
  %v1680 = vsel %vm1424, %v1201, %v1552
  %v1681 = vsel %vm1425, %v1203, %v1553
  %v1682 = vsel %vm1426, %v1314, %v1554
  %v1683 = vsel %vm1427, %v1316, %v1555
  %v1684 = vsel %vm1428, %v981, %v1556
  %v1685 = vsel %vm1429, %v983, %v1557
  %v1686 = vsel %vm1430, %v1094, %v1558
  %v1687 = vsel %vm1431, %v1096, %v1559
  %v1688 = vsel %vm1432, %v1207, %v1560
  %v1689 = vsel %vm1433, %v1209, %v1561
  %v1690 = vsel %vm1434, %v1320, %v1562
  %v1691 = vsel %vm1435, %v1322, %v1563
  %v1692 = vsel %vm1436, %v985, %v1564
  %v1693 = vsel %vm1437, %v987, %v1565
  %v1694 = vsel %vm1438, %v1098, %v1566
  %v1695 = vsel %vm1439, %v1100, %v1567
  %v1696 = vsel %vm1440, %v1211, %v1568
  %v1697 = vsel %vm1441, %v1213, %v1569
  %v1698 = vsel %vm1442, %v1324, %v1570
  %v1699 = vsel %vm1443, %v1326, %v1571
  %v1700 = vsel %vm1444, %v991, %v1572
  %v1701 = vsel %vm1445, %v993, %v1573
  %v1702 = vsel %vm1446, %v1104, %v1574
  %v1703 = vsel %vm1447, %v1106, %v1575
  %v1704 = vsel %vm1448, %v1217, %v1576
  %v1705 = vsel %vm1449, %v1219, %v1577
  %v1706 = vsel %vm1450, %v1330, %v1578
  %v1707 = vsel %vm1451, %v1332, %v1579
  %v1708 = vsel %vm1452, %v995, %v1580
  %v1709 = vsel %vm1453, %v997, %v1581
  %v1710 = vsel %vm1454, %v1108, %v1582
  %v1711 = vsel %vm1455, %v1110, %v1583
  %v1712 = vsel %vm1456, %v1221, %v1584
  %v1713 = vsel %vm1457, %v1223, %v1585
  %v1714 = vsel %vm1458, %v1334, %v1586
  %v1715 = vsel %vm1459, %v1336, %v1587
  %v1716 = vsel %vm1460, %v1001, %v1588
  %v1717 = vsel %vm1461, %v1003, %v1589
  %v1718 = vsel %vm1462, %v1114, %v1590
  %v1719 = vsel %vm1463, %v1116, %v1591
  %v1720 = vsel %vm1464, %v1227, %v1592
  %v1721 = vsel %vm1465, %v1229, %v1593
  %v1722 = vsel %vm1466, %v1340, %v1594
  %v1723 = vsel %vm1467, %v1342, %v1595
  %v1724 = vsel %vm1468, %v1005, %v1596
  %v1725 = vsel %vm1469, %v1007, %v1597
  %v1726 = vsel %vm1470, %v1118, %v1598
  %v1727 = vsel %vm1471, %v1120, %v1599
  %v1728 = vsel %vm1472, %v1231, %v1600
  %v1729 = vsel %vm1473, %v1233, %v1601
  %v1730 = vsel %vm1474, %v1344, %v1602
  %v1731 = vsel %vm1475, %v1346, %v1603
  %v1732 = vpack.c.bf16 %v1612, %v1604
  %v1733 = vpack.c.bf16 %v1613, %v1605
  %v1734 = vpack.c.bf16 %v1614, %v1606
  %v1735 = vpack.c.bf16 %v1615, %v1607
  %v1736 = vpack.c.bf16 %v1616, %v1608
  %v1737 = vpack.c.bf16 %v1617, %v1609
  %v1738 = vpack.c.bf16 %v1618, %v1610
  %v1739 = vpack.c.bf16 %v1619, %v1611
  %v1740 = vpack.c.bf16 %v1628, %v1620
  %v1741 = vpack.c.bf16 %v1629, %v1621
  %v1742 = vpack.c.bf16 %v1630, %v1622
  %v1743 = vpack.c.bf16 %v1631, %v1623
  %v1744 = vpack.c.bf16 %v1632, %v1624
  %v1745 = vpack.c.bf16 %v1633, %v1625
  %v1746 = vpack.c.bf16 %v1634, %v1626
  %v1747 = vpack.c.bf16 %v1635, %v1627
  %v1748 = vpack.c.bf16 %v1644, %v1636
  %v1749 = vpack.c.bf16 %v1645, %v1637
  %v1750 = vpack.c.bf16 %v1646, %v1638
  %v1751 = vpack.c.bf16 %v1647, %v1639
  %v1752 = vpack.c.bf16 %v1648, %v1640
  %v1753 = vpack.c.bf16 %v1649, %v1641
  %v1754 = vpack.c.bf16 %v1650, %v1642
  %v1755 = vpack.c.bf16 %v1651, %v1643
  %v1756 = vpack.c.bf16 %v1660, %v1652
  %v1757 = vpack.c.bf16 %v1661, %v1653
  %v1758 = vpack.c.bf16 %v1662, %v1654
  %v1759 = vpack.c.bf16 %v1663, %v1655
  %v1760 = vpack.c.bf16 %v1664, %v1656
  %v1761 = vpack.c.bf16 %v1665, %v1657
  %v1762 = vpack.c.bf16 %v1666, %v1658
  %v1763 = vpack.c.bf16 %v1667, %v1659
  %v1764 = vpack.c.bf16 %v1676, %v1668
  %v1765 = vpack.c.bf16 %v1677, %v1669
  %v1766 = vpack.c.bf16 %v1678, %v1670
  %v1767 = vpack.c.bf16 %v1679, %v1671
  %v1768 = vpack.c.bf16 %v1680, %v1672
  %v1769 = vpack.c.bf16 %v1681, %v1673
  %v1770 = vpack.c.bf16 %v1682, %v1674
  %v1771 = vpack.c.bf16 %v1683, %v1675
  %v1772 = vpack.c.bf16 %v1692, %v1684
  %v1773 = vpack.c.bf16 %v1693, %v1685
  %v1774 = vpack.c.bf16 %v1694, %v1686
  %v1775 = vpack.c.bf16 %v1695, %v1687
  %v1776 = vpack.c.bf16 %v1696, %v1688
  %v1777 = vpack.c.bf16 %v1697, %v1689
  %v1778 = vpack.c.bf16 %v1698, %v1690
  %v1779 = vpack.c.bf16 %v1699, %v1691
  %v1780 = vpack.c.bf16 %v1708, %v1700
  %v1781 = vpack.c.bf16 %v1709, %v1701
  %v1782 = vpack.c.bf16 %v1710, %v1702
  %v1783 = vpack.c.bf16 %v1711, %v1703
  %v1784 = vpack.c.bf16 %v1712, %v1704
  %v1785 = vpack.c.bf16 %v1713, %v1705
  %v1786 = vpack.c.bf16 %v1714, %v1706
  %v1787 = vpack.c.bf16 %v1715, %v1707
  %v1788 = vpack.c.bf16 %v1724, %v1716
  %v1789 = vpack.c.bf16 %v1725, %v1717
  %v1790 = vpack.c.bf16 %v1726, %v1718
  %v1791 = vpack.c.bf16 %v1727, %v1719
  %v1792 = vpack.c.bf16 %v1728, %v1720
  %v1793 = vpack.c.bf16 %v1729, %v1721
  %v1794 = vpack.c.bf16 %v1730, %v1722
  %v1795 = vpack.c.bf16 %v1731, %v1723
  %v1796 = vld [vmem:[%s2] sm:$0xf]
  %v1797 = vld [vmem:[%s2 + $0x4] sm:$0xf]
  %v1798 = vld [vmem:[%s2 + $0x8] sm:$0xf]
  %v1799 = vld [vmem:[%s2 + $0xc] sm:$0xf]
  %v1800 = vld [vmem:[%s2 + $0x10] sm:$0xf]
  %v1801 = vld [vmem:[%s2 + $0x14] sm:$0xf]
  %v1802 = vld [vmem:[%s2 + $0x18] sm:$0xf]
  %v1803 = vld [vmem:[%s2 + $0x1c] sm:$0xf]
  %v1804 = vld [vmem:[%s2 + $0x20] sm:$0xf]
  %v1805 = vld [vmem:[%s2 + $0x24] sm:$0xf]
  %v1806 = vld [vmem:[%s2 + $0x28] sm:$0xf]
  %v1807 = vld [vmem:[%s2 + $0x2c] sm:$0xf]
  %v1808 = vld [vmem:[%s2 + $0x30] sm:$0xf]
  %v1809 = vld [vmem:[%s2 + $0x34] sm:$0xf]
  %v1810 = vld [vmem:[%s2 + $0x38] sm:$0xf]
  %v1811 = vld [vmem:[%s2 + $0x3c] sm:$0xf]
  %v1812 = vld [vmem:[%s2 + $0x40] sm:$0xf]
  %v1813 = vld [vmem:[%s2 + $0x44] sm:$0xf]
  %v1814 = vld [vmem:[%s2 + $0x48] sm:$0xf]
  %v1815 = vld [vmem:[%s2 + $0x4c] sm:$0xf]
  %v1816 = vld [vmem:[%s2 + $0x50] sm:$0xf]
  %v1817 = vld [vmem:[%s2 + $0x54] sm:$0xf]
  %v1818 = vld [vmem:[%s2 + $0x58] sm:$0xf]
  %v1819 = vld [vmem:[%s2 + $0x5c] sm:$0xf]
  %v1820 = vld [vmem:[%s2 + $0x60] sm:$0xf]
  %v1821 = vld [vmem:[%s2 + $0x64] sm:$0xf]
  %v1822 = vld [vmem:[%s2 + $0x68] sm:$0xf]
  %v1823 = vld [vmem:[%s2 + $0x6c] sm:$0xf]
  %v1824 = vld [vmem:[%s2 + $0x70] sm:$0xf]
  %v1825 = vld [vmem:[%s2 + $0x74] sm:$0xf]
  %v1826 = vld [vmem:[%s2 + $0x78] sm:$0xf]
  %v1827 = vld [vmem:[%s2 + $0x7c] sm:$0xf]
  %v1828 = vld [vmem:[%s2 + $0x80] sm:$0xf]
  %v1829 = vld [vmem:[%s2 + $0x84] sm:$0xf]
  %v1830 = vld [vmem:[%s2 + $0x88] sm:$0xf]
  %v1831 = vld [vmem:[%s2 + $0x8c] sm:$0xf]
  %v1832 = vld [vmem:[%s2 + $0x90] sm:$0xf]
  %v1833 = vld [vmem:[%s2 + $0x94] sm:$0xf]
  %v1834 = vld [vmem:[%s2 + $0x98] sm:$0xf]
  %v1835 = vld [vmem:[%s2 + $0x9c] sm:$0xf]
  %v1836 = vld [vmem:[%s2 + $0xa0] sm:$0xf]
  %v1837 = vld [vmem:[%s2 + $0xa4] sm:$0xf]
  %v1838 = vld [vmem:[%s2 + $0xa8] sm:$0xf]
  %v1839 = vld [vmem:[%s2 + $0xac] sm:$0xf]
  %v1840 = vld [vmem:[%s2 + $0xb0] sm:$0xf]
  %v1841 = vld [vmem:[%s2 + $0xb4] sm:$0xf]
  %v1842 = vld [vmem:[%s2 + $0xb8] sm:$0xf]
  %v1843 = vld [vmem:[%s2 + $0xbc] sm:$0xf]
  %v1844 = vld [vmem:[%s2 + $0xc0] sm:$0xf]
  %v1845 = vld [vmem:[%s2 + $0xc4] sm:$0xf]
  %v1846 = vld [vmem:[%s2 + $0xc8] sm:$0xf]
  %v1847 = vld [vmem:[%s2 + $0xcc] sm:$0xf]
  %v1848 = vld [vmem:[%s2 + $0xd0] sm:$0xf]
  %v1849 = vld [vmem:[%s2 + $0xd4] sm:$0xf]
  %v1850 = vld [vmem:[%s2 + $0xd8] sm:$0xf]
  %v1851 = vld [vmem:[%s2 + $0xdc] sm:$0xf]
  %v1852 = vld [vmem:[%s2 + $0xe0] sm:$0xf]
  %v1853 = vld [vmem:[%s2 + $0xe4] sm:$0xf]
  %v1854 = vld [vmem:[%s2 + $0xe8] sm:$0xf]
  %v1855 = vld [vmem:[%s2 + $0xec] sm:$0xf]
  %v1856 = vld [vmem:[%s2 + $0xf0] sm:$0xf]
  %v1857 = vld [vmem:[%s2 + $0xf4] sm:$0xf]
  %v1858 = vld [vmem:[%s2 + $0xf8] sm:$0xf]
  %v1859 = vld [vmem:[%s2 + $0xfc] sm:$0xf]
  %v1860 = vld [vmem:[%s2 + $0x100] sm:$0xf]
  %v1861 = vld [vmem:[%s2 + $0x104] sm:$0xf]
  %v1862 = vld [vmem:[%s2 + $0x108] sm:$0xf]
  %v1863 = vld [vmem:[%s2 + $0x10c] sm:$0xf]
  %v1864 = vld [vmem:[%s2 + $0x110] sm:$0xf]
  %v1865 = vld [vmem:[%s2 + $0x114] sm:$0xf]
  %v1866 = vld [vmem:[%s2 + $0x118] sm:$0xf]
  %v1867 = vld [vmem:[%s2 + $0x11c] sm:$0xf]
  %v1868 = vld [vmem:[%s2 + $0x120] sm:$0xf]
  %v1869 = vld [vmem:[%s2 + $0x124] sm:$0xf]
  %v1870 = vld [vmem:[%s2 + $0x128] sm:$0xf]
  %v1871 = vld [vmem:[%s2 + $0x12c] sm:$0xf]
  %v1872 = vld [vmem:[%s2 + $0x130] sm:$0xf]
  %v1873 = vld [vmem:[%s2 + $0x134] sm:$0xf]
  %v1874 = vld [vmem:[%s2 + $0x138] sm:$0xf]
  %v1875 = vld [vmem:[%s2 + $0x13c] sm:$0xf]
  %v1876 = vld [vmem:[%s2 + $0x140] sm:$0xf]
  %v1877 = vld [vmem:[%s2 + $0x144] sm:$0xf]
  %v1878 = vld [vmem:[%s2 + $0x148] sm:$0xf]
  %v1879 = vld [vmem:[%s2 + $0x14c] sm:$0xf]
  %v1880 = vld [vmem:[%s2 + $0x150] sm:$0xf]
  %v1881 = vld [vmem:[%s2 + $0x154] sm:$0xf]
  %v1882 = vld [vmem:[%s2 + $0x158] sm:$0xf]
  %v1883 = vld [vmem:[%s2 + $0x15c] sm:$0xf]
  %v1884 = vld [vmem:[%s2 + $0x160] sm:$0xf]
  %v1885 = vld [vmem:[%s2 + $0x164] sm:$0xf]
  %v1886 = vld [vmem:[%s2 + $0x168] sm:$0xf]
  %v1887 = vld [vmem:[%s2 + $0x16c] sm:$0xf]
  %v1888 = vld [vmem:[%s2 + $0x170] sm:$0xf]
  %v1889 = vld [vmem:[%s2 + $0x174] sm:$0xf]
  %v1890 = vld [vmem:[%s2 + $0x178] sm:$0xf]
  %v1891 = vld [vmem:[%s2 + $0x17c] sm:$0xf]
  %v1892 = vld [vmem:[%s2 + $0x180] sm:$0xf]
  %v1893 = vld [vmem:[%s2 + $0x184] sm:$0xf]
  %v1894 = vld [vmem:[%s2 + $0x188] sm:$0xf]
  %v1895 = vld [vmem:[%s2 + $0x18c] sm:$0xf]
  %v1896 = vld [vmem:[%s2 + $0x190] sm:$0xf]
  %v1897 = vld [vmem:[%s2 + $0x194] sm:$0xf]
  %v1898 = vld [vmem:[%s2 + $0x198] sm:$0xf]
  %v1899 = vld [vmem:[%s2 + $0x19c] sm:$0xf]
  %v1900 = vld [vmem:[%s2 + $0x1a0] sm:$0xf]
  %v1901 = vld [vmem:[%s2 + $0x1a4] sm:$0xf]
  %v1902 = vld [vmem:[%s2 + $0x1a8] sm:$0xf]
  %v1903 = vld [vmem:[%s2 + $0x1ac] sm:$0xf]
  %v1904 = vld [vmem:[%s2 + $0x1b0] sm:$0xf]
  %v1905 = vld [vmem:[%s2 + $0x1b4] sm:$0xf]
  %v1906 = vld [vmem:[%s2 + $0x1b8] sm:$0xf]
  %v1907 = vld [vmem:[%s2 + $0x1bc] sm:$0xf]
  %v1908 = vld [vmem:[%s2 + $0x1c0] sm:$0xf]
  %v1909 = vld [vmem:[%s2 + $0x1c4] sm:$0xf]
  %v1910 = vld [vmem:[%s2 + $0x1c8] sm:$0xf]
  %v1911 = vld [vmem:[%s2 + $0x1cc] sm:$0xf]
  %v1912 = vld [vmem:[%s2 + $0x1d0] sm:$0xf]
  %v1913 = vld [vmem:[%s2 + $0x1d4] sm:$0xf]
  %v1914 = vld [vmem:[%s2 + $0x1d8] sm:$0xf]
  %v1915 = vld [vmem:[%s2 + $0x1dc] sm:$0xf]
  %v1916 = vld [vmem:[%s2 + $0x1e0] sm:$0xf]
  %v1917 = vld [vmem:[%s2 + $0x1e4] sm:$0xf]
  %v1918 = vld [vmem:[%s2 + $0x1e8] sm:$0xf]
  %v1919 = vld [vmem:[%s2 + $0x1ec] sm:$0xf]
  %v1920 = vld [vmem:[%s2 + $0x1f0] sm:$0xf]
  %v1921 = vld [vmem:[%s2 + $0x1f4] sm:$0xf]
  %v1922 = vld [vmem:[%s2 + $0x1f8] sm:$0xf]
  %v1923 = vld [vmem:[%s2 + $0x1fc] sm:$0xf]
  %v2052 = vunpack.c.l.b16 %v1796
  %v2053 = vunpack.c.l.b16 %v1797
  %v2054 = vunpack.c.l.b16 %v1798
  %v2055 = vunpack.c.l.b16 %v1799
  %v2056 = vunpack.c.l.b16 %v1800
  %v2057 = vunpack.c.l.b16 %v1801
  %v2058 = vunpack.c.l.b16 %v1802
  %v2059 = vunpack.c.l.b16 %v1803
  %v2060 = vunpack.c.l.b16 %v1804
  %v2061 = vunpack.c.l.b16 %v1805
  %v2062 = vunpack.c.l.b16 %v1806
  %v2063 = vunpack.c.l.b16 %v1807
  %v2064 = vunpack.c.l.b16 %v1808
  %v2065 = vunpack.c.l.b16 %v1809
  %v2066 = vunpack.c.l.b16 %v1810
  %v2067 = vunpack.c.l.b16 %v1811
  %v2068 = vunpack.c.l.b16 %v1812
  %v2069 = vunpack.c.l.b16 %v1813
  %v2070 = vunpack.c.l.b16 %v1814
  %v2071 = vunpack.c.l.b16 %v1815
  %v2072 = vunpack.c.l.b16 %v1816
  %v2073 = vunpack.c.l.b16 %v1817
  %v2074 = vunpack.c.l.b16 %v1818
  %v2075 = vunpack.c.l.b16 %v1819
  %v2076 = vunpack.c.l.b16 %v1820
  %v2077 = vunpack.c.l.b16 %v1821
  %v2078 = vunpack.c.l.b16 %v1822
  %v2079 = vunpack.c.l.b16 %v1823
  %v2080 = vunpack.c.l.b16 %v1824
  %v2081 = vunpack.c.l.b16 %v1825
  %v2082 = vunpack.c.l.b16 %v1826
  %v2083 = vunpack.c.l.b16 %v1827
  %v2084 = vunpack.c.l.b16 %v1828
  %v2085 = vunpack.c.l.b16 %v1829
  %v2086 = vunpack.c.l.b16 %v1830
  %v2087 = vunpack.c.l.b16 %v1831
  %v2088 = vunpack.c.l.b16 %v1832
  %v2089 = vunpack.c.l.b16 %v1833
  %v2090 = vunpack.c.l.b16 %v1834
  %v2091 = vunpack.c.l.b16 %v1835
  %v2092 = vunpack.c.l.b16 %v1836
  %v2093 = vunpack.c.l.b16 %v1837
  %v2094 = vunpack.c.l.b16 %v1838
  %v2095 = vunpack.c.l.b16 %v1839
  %v2096 = vunpack.c.l.b16 %v1840
  %v2097 = vunpack.c.l.b16 %v1841
  %v2098 = vunpack.c.l.b16 %v1842
  %v2099 = vunpack.c.l.b16 %v1843
  %v2100 = vunpack.c.l.b16 %v1844
  %v2101 = vunpack.c.l.b16 %v1845
  %v2102 = vunpack.c.l.b16 %v1846
  %v2103 = vunpack.c.l.b16 %v1847
  %v2104 = vunpack.c.l.b16 %v1848
  %v2105 = vunpack.c.l.b16 %v1849
  %v2106 = vunpack.c.l.b16 %v1850
  %v2107 = vunpack.c.l.b16 %v1851
  %v2108 = vunpack.c.l.b16 %v1852
  %v2109 = vunpack.c.l.b16 %v1853
  %v2110 = vunpack.c.l.b16 %v1854
  %v2111 = vunpack.c.l.b16 %v1855
  %v2112 = vunpack.c.l.b16 %v1856
  %v2113 = vunpack.c.l.b16 %v1857
  %v2114 = vunpack.c.l.b16 %v1858
  %v2115 = vunpack.c.l.b16 %v1859
  %v2116 = vunpack.c.l.b16 %v1860
  %v2117 = vunpack.c.l.b16 %v1861
  %v2118 = vunpack.c.l.b16 %v1862
  %v2119 = vunpack.c.l.b16 %v1863
  %v2120 = vunpack.c.l.b16 %v1864
  %v2121 = vunpack.c.l.b16 %v1865
  %v2122 = vunpack.c.l.b16 %v1866
  %v2123 = vunpack.c.l.b16 %v1867
  %v2124 = vunpack.c.l.b16 %v1868
  %v2125 = vunpack.c.l.b16 %v1869
  %v2126 = vunpack.c.l.b16 %v1870
  %v2127 = vunpack.c.l.b16 %v1871
  %v2128 = vunpack.c.l.b16 %v1872
  %v2129 = vunpack.c.l.b16 %v1873
  %v2130 = vunpack.c.l.b16 %v1874
  %v2131 = vunpack.c.l.b16 %v1875
  %v2132 = vunpack.c.l.b16 %v1876
  %v2133 = vunpack.c.l.b16 %v1877
  %v2134 = vunpack.c.l.b16 %v1878
  %v2135 = vunpack.c.l.b16 %v1879
  %v2136 = vunpack.c.l.b16 %v1880
  %v2137 = vunpack.c.l.b16 %v1881
  %v2138 = vunpack.c.l.b16 %v1882
  %v2139 = vunpack.c.l.b16 %v1883
  %v2140 = vunpack.c.l.b16 %v1884
  %v2141 = vunpack.c.l.b16 %v1885
  %v2142 = vunpack.c.l.b16 %v1886
  %v2143 = vunpack.c.l.b16 %v1887
  %v2144 = vunpack.c.l.b16 %v1888
  %v2145 = vunpack.c.l.b16 %v1889
  %v2146 = vunpack.c.l.b16 %v1890
  %v2147 = vunpack.c.l.b16 %v1891
  %v2148 = vunpack.c.l.b16 %v1892
  %v2149 = vunpack.c.l.b16 %v1893
  %v2150 = vunpack.c.l.b16 %v1894
  %v2151 = vunpack.c.l.b16 %v1895
  %v2152 = vunpack.c.l.b16 %v1896
  %v2153 = vunpack.c.l.b16 %v1897
  %v2154 = vunpack.c.l.b16 %v1898
  %v2155 = vunpack.c.l.b16 %v1899
  %v2156 = vunpack.c.l.b16 %v1900
  %v2157 = vunpack.c.l.b16 %v1901
  %v2158 = vunpack.c.l.b16 %v1902
  %v2159 = vunpack.c.l.b16 %v1903
  %v2160 = vunpack.c.l.b16 %v1904
  %v2161 = vunpack.c.l.b16 %v1905
  %v2162 = vunpack.c.l.b16 %v1906
  %v2163 = vunpack.c.l.b16 %v1907
  %v2164 = vunpack.c.l.b16 %v1908
  %v2165 = vunpack.c.l.b16 %v1909
  %v2166 = vunpack.c.l.b16 %v1910
  %v2167 = vunpack.c.l.b16 %v1911
  %v2168 = vunpack.c.l.b16 %v1912
  %v2169 = vunpack.c.l.b16 %v1913
  %v2170 = vunpack.c.l.b16 %v1914
  %v2171 = vunpack.c.l.b16 %v1915
  %v2172 = vunpack.c.l.b16 %v1916
  %v2173 = vunpack.c.l.b16 %v1917
  %v2174 = vunpack.c.l.b16 %v1918
  %v2175 = vunpack.c.l.b16 %v1919
  %v2176 = vunpack.c.l.b16 %v1920
  %v2177 = vunpack.c.l.b16 %v1921
  %v2178 = vunpack.c.l.b16 %v1922
  %v2179 = vunpack.c.l.b16 %v1923
  %v2180 = vpack.c.b16 %v2053, %v2052
  %v2181 = vpack.c.b16 %v2055, %v2054
  %v2182 = vpack.c.b16 %v2057, %v2056
  %v2183 = vpack.c.b16 %v2059, %v2058
  %v2184 = vpack.c.b16 %v2061, %v2060
  %v2185 = vpack.c.b16 %v2063, %v2062
  %v2186 = vpack.c.b16 %v2065, %v2064
  %v2187 = vpack.c.b16 %v2067, %v2066
  %v2188 = vpack.c.b16 %v2069, %v2068
  %v2189 = vpack.c.b16 %v2071, %v2070
  %v2190 = vpack.c.b16 %v2073, %v2072
  %v2191 = vpack.c.b16 %v2075, %v2074
  %v2192 = vpack.c.b16 %v2077, %v2076
  %v2193 = vpack.c.b16 %v2079, %v2078
  %v2194 = vpack.c.b16 %v2081, %v2080
  %v2195 = vpack.c.b16 %v2083, %v2082
  %v2196 = vpack.c.b16 %v2085, %v2084
  %v2197 = vpack.c.b16 %v2087, %v2086
  %v2198 = vpack.c.b16 %v2089, %v2088
  %v2199 = vpack.c.b16 %v2091, %v2090
  %v2200 = vpack.c.b16 %v2093, %v2092
  %v2201 = vpack.c.b16 %v2095, %v2094
  %v2202 = vpack.c.b16 %v2097, %v2096
  %v2203 = vpack.c.b16 %v2099, %v2098
  %v2204 = vpack.c.b16 %v2101, %v2100
  %v2205 = vpack.c.b16 %v2103, %v2102
  %v2206 = vpack.c.b16 %v2105, %v2104
  %v2207 = vpack.c.b16 %v2107, %v2106
  %v2208 = vpack.c.b16 %v2109, %v2108
  %v2209 = vpack.c.b16 %v2111, %v2110
  %v2210 = vpack.c.b16 %v2113, %v2112
  %v2211 = vpack.c.b16 %v2115, %v2114
  %v2212 = vpack.c.b16 %v2117, %v2116
  %v2213 = vpack.c.b16 %v2119, %v2118
  %v2214 = vpack.c.b16 %v2121, %v2120
  %v2215 = vpack.c.b16 %v2123, %v2122
  %v2216 = vpack.c.b16 %v2125, %v2124
  %v2217 = vpack.c.b16 %v2127, %v2126
  %v2218 = vpack.c.b16 %v2129, %v2128
  %v2219 = vpack.c.b16 %v2131, %v2130
  %v2220 = vpack.c.b16 %v2133, %v2132
  %v2221 = vpack.c.b16 %v2135, %v2134
  %v2222 = vpack.c.b16 %v2137, %v2136
  %v2223 = vpack.c.b16 %v2139, %v2138
  %v2224 = vpack.c.b16 %v2141, %v2140
  %v2225 = vpack.c.b16 %v2143, %v2142
  %v2226 = vpack.c.b16 %v2145, %v2144
  %v2227 = vpack.c.b16 %v2147, %v2146
  %v2228 = vpack.c.b16 %v2149, %v2148
  %v2229 = vpack.c.b16 %v2151, %v2150
  %v2230 = vpack.c.b16 %v2153, %v2152
  %v2231 = vpack.c.b16 %v2155, %v2154
  %v2232 = vpack.c.b16 %v2157, %v2156
  %v2233 = vpack.c.b16 %v2159, %v2158
  %v2234 = vpack.c.b16 %v2161, %v2160
  %v2235 = vpack.c.b16 %v2163, %v2162
  %v2236 = vpack.c.b16 %v2165, %v2164
  %v2237 = vpack.c.b16 %v2167, %v2166
  %v2238 = vpack.c.b16 %v2169, %v2168
  %v2239 = vpack.c.b16 %v2171, %v2170
  %v2240 = vpack.c.b16 %v2173, %v2172
  %v2241 = vpack.c.b16 %v2175, %v2174
  %v2242 = vpack.c.b16 %v2177, %v2176
  %v2243 = vpack.c.b16 %v2179, %v2178
  %2308 = vmatprep.subr.bf16.mxu0 0
  %2309 = vmatpush1.bf16.msra.mxu0 %v2180
  %2310 = vmatprep.subr.bf16.mxu0 0
  %2311 = vmatpush1.bf16.msra.mxu0 %v2181
  %2312 = vmatprep.subr.bf16.mxu0 0
  %2313 = vmatpush1.bf16.msra.mxu0 %v2182
  %2314 = vmatprep.subr.bf16.mxu0 0
  %2315 = vmatpush1.bf16.msra.mxu0 %v2183
  %2316 = vmatprep.subr.bf16.mxu0 0
  %2317 = vmatpush1.bf16.msra.mxu0 %v2184
  %2318 = vmatprep.subr.bf16.mxu0 0
  %2319 = vmatpush1.bf16.msra.mxu0 %v2185
  %2320 = vmatprep.subr.bf16.mxu0 0
  %2321 = vmatpush1.bf16.msra.mxu0 %v2186
  %2322 = vmatprep.subr.bf16.mxu0 0
  %2323 = vmatpush1.bf16.msra.mxu0 %v2187
  %2324 = vmatprep.subr.bf16.mxu0 0
  %2325 = vmatpush1.bf16.msra.mxu0 %v2188
  %2326 = vmatprep.subr.bf16.mxu0 0
  %2327 = vmatpush1.bf16.msra.mxu0 %v2189
  %2328 = vmatprep.subr.bf16.mxu0 0
  %2329 = vmatpush1.bf16.msra.mxu0 %v2190
  %2330 = vmatprep.subr.bf16.mxu0 0
  %2331 = vmatpush1.bf16.msra.mxu0 %v2191
  %2332 = vmatprep.subr.bf16.mxu0 0
  %2333 = vmatpush1.bf16.msra.mxu0 %v2192
  %2334 = vmatprep.subr.bf16.mxu0 0
  %2335 = vmatpush1.bf16.msra.mxu0 %v2193
  %2336 = vmatprep.subr.bf16.mxu0 0
  %2337 = vmatpush1.bf16.msra.mxu0 %v2194
  %2338 = vmatprep.subr.bf16.mxu0 0
  %2339 = vmatpush1.bf16.msra.mxu0 %v2195
  %2340 = vmatprep.mubr.bf16.mxu0 %v1733
  %2341 = vmatmul.mubr.bf16.gmra.mrb[0].mxu0 %v1732
  %v2342 = vpop.f32.mrb[0].mxu0
  %v2343 = vadd.f32 0.0, %v2342
  %v2344 = vpop.f32.mrb[0].mxu0
  %v2345 = vpop.f32.mrb[0].mxu0
  %v2346 = vadd.f32 0.0, %v2345
  %v2347 = vpop.f32.mrb[0].mxu0
  %2348 = vmatprep.mubr.bf16.mxu0 %v1741
  %2349 = vmatmul.mubr.bf16.gmra.mrb[0].mxu0 %v1740
  %v2350 = vpop.f32.mrb[0].mxu0
  %v2351 = vadd.f32 0.0, %v2350
  %v2352 = vpop.f32.mrb[0].mxu0
  %v2353 = vpop.f32.mrb[0].mxu0
  %v2354 = vadd.f32 0.0, %v2353
  %v2355 = vpop.f32.mrb[0].mxu0
  %2356 = vmatprep.mubr.bf16.mxu0 %v1749
  %2357 = vmatmul.mubr.bf16.gmra.mrb[0].mxu0 %v1748
  %v2358 = vpop.f32.mrb[0].mxu0
  %v2359 = vadd.f32 0.0, %v2358
  %v2360 = vpop.f32.mrb[0].mxu0
  %v2361 = vpop.f32.mrb[0].mxu0
  %v2362 = vadd.f32 0.0, %v2361
  %v2363 = vpop.f32.mrb[0].mxu0
  %2364 = vmatprep.mubr.bf16.mxu0 %v1757
  %2365 = vmatmul.mubr.bf16.gmra.mrb[0].mxu0 %v1756
  %v2366 = vpop.f32.mrb[0].mxu0
  %v2367 = vadd.f32 0.0, %v2366
  %v2368 = vpop.f32.mrb[0].mxu0
  %v2369 = vpop.f32.mrb[0].mxu0
  %v2370 = vadd.f32 0.0, %v2369
  %v2371 = vpop.f32.mrb[0].mxu0
  %2372 = vmatprep.mubr.bf16.mxu0 %v1765
  %2373 = vmatmul.mubr.bf16.gmra.mrb[0].mxu0 %v1764
  %v2374 = vpop.f32.mrb[0].mxu0
  %v2375 = vadd.f32 0.0, %v2374
  %v2376 = vpop.f32.mrb[0].mxu0
  %v2377 = vpop.f32.mrb[0].mxu0
  %v2378 = vadd.f32 0.0, %v2377
  %v2379 = vpop.f32.mrb[0].mxu0
  %2380 = vmatprep.mubr.bf16.mxu0 %v1773
  %2381 = vmatmul.mubr.bf16.gmra.mrb[0].mxu0 %v1772
  %v2382 = vpop.f32.mrb[0].mxu0
  %v2383 = vadd.f32 0.0, %v2382
  %v2384 = vpop.f32.mrb[0].mxu0
  %v2385 = vpop.f32.mrb[0].mxu0
  %v2386 = vadd.f32 0.0, %v2385
  %v2387 = vpop.f32.mrb[0].mxu0
  %2388 = vmatprep.mubr.bf16.mxu0 %v1781
  %2389 = vmatmul.mubr.bf16.gmra.mrb[0].mxu0 %v1780
  %v2390 = vpop.f32.mrb[0].mxu0
  %v2391 = vadd.f32 0.0, %v2390
  %v2392 = vpop.f32.mrb[0].mxu0
  %v2393 = vpop.f32.mrb[0].mxu0
  %v2394 = vadd.f32 0.0, %v2393
  %v2395 = vpop.f32.mrb[0].mxu0
  %2396 = vmatprep.mubr.bf16.mxu0 %v1789
  %2397 = vmatmul.mubr.bf16.gmra.mrb[0].mxu0 %v1788
  %v2398 = vpop.f32.mrb[0].mxu0
  %v2399 = vadd.f32 0.0, %v2398
  %v2400 = vpop.f32.mrb[0].mxu0
  %v2401 = vpop.f32.mrb[0].mxu0
  %v2402 = vadd.f32 0.0, %v2401
  %v2403 = vpop.f32.mrb[0].mxu0
  %2404 = vdwg.mxu0
  %2405 = vmatprep.subr.bf16.mxu0 0
  %2406 = vmatpush1.bf16.msra.mxu0 %v2196
  %2407 = vmatprep.subr.bf16.mxu0 0
  %2408 = vmatpush1.bf16.msra.mxu0 %v2197
  %2409 = vmatprep.subr.bf16.mxu0 0
  %2410 = vmatpush1.bf16.msra.mxu0 %v2198
  %2411 = vmatprep.subr.bf16.mxu0 0
  %2412 = vmatpush1.bf16.msra.mxu0 %v2199
  %2413 = vmatprep.subr.bf16.mxu0 0
  %2414 = vmatpush1.bf16.msra.mxu0 %v2200
  %2415 = vmatprep.subr.bf16.mxu0 0
  %2416 = vmatpush1.bf16.msra.mxu0 %v2201
  %2417 = vmatprep.subr.bf16.mxu0 0
  %2418 = vmatpush1.bf16.msra.mxu0 %v2202
  %2419 = vmatprep.subr.bf16.mxu0 0
  %2420 = vmatpush1.bf16.msra.mxu0 %v2203
  %2421 = vmatprep.subr.bf16.mxu0 0
  %2422 = vmatpush1.bf16.msra.mxu0 %v2204
  %2423 = vmatprep.subr.bf16.mxu0 0
  %2424 = vmatpush1.bf16.msra.mxu0 %v2205
  %2425 = vmatprep.subr.bf16.mxu0 0
  %2426 = vmatpush1.bf16.msra.mxu0 %v2206
  %2427 = vmatprep.subr.bf16.mxu0 0
  %2428 = vmatpush1.bf16.msra.mxu0 %v2207
  %2429 = vmatprep.subr.bf16.mxu0 0
  %2430 = vmatpush1.bf16.msra.mxu0 %v2208
  %2431 = vmatprep.subr.bf16.mxu0 0
  %2432 = vmatpush1.bf16.msra.mxu0 %v2209
  %2433 = vmatprep.subr.bf16.mxu0 0
  %2434 = vmatpush1.bf16.msra.mxu0 %v2210
  %2435 = vmatprep.subr.bf16.mxu0 0
  %2436 = vmatpush1.bf16.msra.mxu0 %v2211
  %2437 = vmatprep.mubr.bf16.mxu0 %v1735
  %2438 = vmatmul.mubr.bf16.gmra.mrb[0].mxu0 %v1734
  %v2439 = vpop.f32.mrb[0].mxu0
  %v2440 = vadd.f32 %v2343, %v2439
  %v2441 = vpop.f32.mrb[0].mxu0
  %v2442 = vpop.f32.mrb[0].mxu0
  %v2443 = vadd.f32 %v2346, %v2442
  %v2444 = vpop.f32.mrb[0].mxu0
  %2445 = vmatprep.mubr.bf16.mxu0 %v1743
  %2446 = vmatmul.mubr.bf16.gmra.mrb[0].mxu0 %v1742
  %v2447 = vpop.f32.mrb[0].mxu0
  %v2448 = vadd.f32 %v2351, %v2447
  %v2449 = vpop.f32.mrb[0].mxu0
  %v2450 = vpop.f32.mrb[0].mxu0
  %v2451 = vadd.f32 %v2354, %v2450
  %v2452 = vpop.f32.mrb[0].mxu0
  %2453 = vmatprep.mubr.bf16.mxu0 %v1751
  %2454 = vmatmul.mubr.bf16.gmra.mrb[0].mxu0 %v1750
  %v2455 = vpop.f32.mrb[0].mxu0
  %v2456 = vadd.f32 %v2359, %v2455
  %v2457 = vpop.f32.mrb[0].mxu0
  %v2458 = vpop.f32.mrb[0].mxu0
  %v2459 = vadd.f32 %v2362, %v2458
  %v2460 = vpop.f32.mrb[0].mxu0
  %2461 = vmatprep.mubr.bf16.mxu0 %v1759
  %2462 = vmatmul.mubr.bf16.gmra.mrb[0].mxu0 %v1758
  %v2463 = vpop.f32.mrb[0].mxu0
  %v2464 = vadd.f32 %v2367, %v2463
  %v2465 = vpop.f32.mrb[0].mxu0
  %v2466 = vpop.f32.mrb[0].mxu0
  %v2467 = vadd.f32 %v2370, %v2466
  %v2468 = vpop.f32.mrb[0].mxu0
  %2469 = vmatprep.mubr.bf16.mxu0 %v1767
  %2470 = vmatmul.mubr.bf16.gmra.mrb[0].mxu0 %v1766
  %v2471 = vpop.f32.mrb[0].mxu0
  %v2472 = vadd.f32 %v2375, %v2471
  %v2473 = vpop.f32.mrb[0].mxu0
  %v2474 = vpop.f32.mrb[0].mxu0
  %v2475 = vadd.f32 %v2378, %v2474
  %v2476 = vpop.f32.mrb[0].mxu0
  %2477 = vmatprep.mubr.bf16.mxu0 %v1775
  %2478 = vmatmul.mubr.bf16.gmra.mrb[0].mxu0 %v1774
  %v2479 = vpop.f32.mrb[0].mxu0
  %v2480 = vadd.f32 %v2383, %v2479
  %v2481 = vpop.f32.mrb[0].mxu0
  %v2482 = vpop.f32.mrb[0].mxu0
  %v2483 = vadd.f32 %v2386, %v2482
  %v2484 = vpop.f32.mrb[0].mxu0
  %2485 = vmatprep.mubr.bf16.mxu0 %v1783
  %2486 = vmatmul.mubr.bf16.gmra.mrb[0].mxu0 %v1782
  %v2487 = vpop.f32.mrb[0].mxu0
  %v2488 = vadd.f32 %v2391, %v2487
  %v2489 = vpop.f32.mrb[0].mxu0
  %v2490 = vpop.f32.mrb[0].mxu0
  %v2491 = vadd.f32 %v2394, %v2490
  %v2492 = vpop.f32.mrb[0].mxu0
  %2493 = vmatprep.mubr.bf16.mxu0 %v1791
  %2494 = vmatmul.mubr.bf16.gmra.mrb[0].mxu0 %v1790
  %v2495 = vpop.f32.mrb[0].mxu0
  %v2496 = vadd.f32 %v2399, %v2495
  %v2497 = vpop.f32.mrb[0].mxu0
  %v2498 = vpop.f32.mrb[0].mxu0
  %v2499 = vadd.f32 %v2402, %v2498
  %v2500 = vpop.f32.mrb[0].mxu0
  %2501 = vdwg.mxu0
  %2502 = vmatprep.subr.bf16.mxu0 0
  %2503 = vmatpush1.bf16.msra.mxu0 %v2212
  %2504 = vmatprep.subr.bf16.mxu0 0
  %2505 = vmatpush1.bf16.msra.mxu0 %v2213
  %2506 = vmatprep.subr.bf16.mxu0 0
  %2507 = vmatpush1.bf16.msra.mxu0 %v2214
  %2508 = vmatprep.subr.bf16.mxu0 0
  %2509 = vmatpush1.bf16.msra.mxu0 %v2215
  %2510 = vmatprep.subr.bf16.mxu0 0
  %2511 = vmatpush1.bf16.msra.mxu0 %v2216
  %2512 = vmatprep.subr.bf16.mxu0 0
  %2513 = vmatpush1.bf16.msra.mxu0 %v2217
  %2514 = vmatprep.subr.bf16.mxu0 0
  %2515 = vmatpush1.bf16.msra.mxu0 %v2218
  %2516 = vmatprep.subr.bf16.mxu0 0
  %2517 = vmatpush1.bf16.msra.mxu0 %v2219
  %2518 = vmatprep.subr.bf16.mxu0 0
  %2519 = vmatpush1.bf16.msra.mxu0 %v2220
  %2520 = vmatprep.subr.bf16.mxu0 0
  %2521 = vmatpush1.bf16.msra.mxu0 %v2221
  %2522 = vmatprep.subr.bf16.mxu0 0
  %2523 = vmatpush1.bf16.msra.mxu0 %v2222
  %2524 = vmatprep.subr.bf16.mxu0 0
  %2525 = vmatpush1.bf16.msra.mxu0 %v2223
  %2526 = vmatprep.subr.bf16.mxu0 0
  %2527 = vmatpush1.bf16.msra.mxu0 %v2224
  %2528 = vmatprep.subr.bf16.mxu0 0
  %2529 = vmatpush1.bf16.msra.mxu0 %v2225
  %2530 = vmatprep.subr.bf16.mxu0 0
  %2531 = vmatpush1.bf16.msra.mxu0 %v2226
  %2532 = vmatprep.subr.bf16.mxu0 0
  %2533 = vmatpush1.bf16.msra.mxu0 %v2227
  %2534 = vmatprep.mubr.bf16.mxu0 %v1737
  %2535 = vmatmul.mubr.bf16.gmra.mrb[0].mxu0 %v1736
  %v2536 = vpop.f32.mrb[0].mxu0
  %v2537 = vadd.f32 %v2440, %v2536
  %v2538 = vpop.f32.mrb[0].mxu0
  %v2539 = vpop.f32.mrb[0].mxu0
  %v2540 = vadd.f32 %v2443, %v2539
  %v2541 = vpop.f32.mrb[0].mxu0
  %2542 = vmatprep.mubr.bf16.mxu0 %v1745
  %2543 = vmatmul.mubr.bf16.gmra.mrb[0].mxu0 %v1744
  %v2544 = vpop.f32.mrb[0].mxu0
  %v2545 = vadd.f32 %v2448, %v2544
  %v2546 = vpop.f32.mrb[0].mxu0
  %v2547 = vpop.f32.mrb[0].mxu0
  %v2548 = vadd.f32 %v2451, %v2547
  %v2549 = vpop.f32.mrb[0].mxu0
  %2550 = vmatprep.mubr.bf16.mxu0 %v1753
  %2551 = vmatmul.mubr.bf16.gmra.mrb[0].mxu0 %v1752
  %v2552 = vpop.f32.mrb[0].mxu0
  %v2553 = vadd.f32 %v2456, %v2552
  %v2554 = vpop.f32.mrb[0].mxu0
  %v2555 = vpop.f32.mrb[0].mxu0
  %v2556 = vadd.f32 %v2459, %v2555
  %v2557 = vpop.f32.mrb[0].mxu0
  %2558 = vmatprep.mubr.bf16.mxu0 %v1761
  %2559 = vmatmul.mubr.bf16.gmra.mrb[0].mxu0 %v1760
  %v2560 = vpop.f32.mrb[0].mxu0
  %v2561 = vadd.f32 %v2464, %v2560
  %v2562 = vpop.f32.mrb[0].mxu0
  %v2563 = vpop.f32.mrb[0].mxu0
  %v2564 = vadd.f32 %v2467, %v2563
  %v2565 = vpop.f32.mrb[0].mxu0
  %2566 = vmatprep.mubr.bf16.mxu0 %v1769
  %2567 = vmatmul.mubr.bf16.gmra.mrb[0].mxu0 %v1768
  %v2568 = vpop.f32.mrb[0].mxu0
  %v2569 = vadd.f32 %v2472, %v2568
  %v2570 = vpop.f32.mrb[0].mxu0
  %v2571 = vpop.f32.mrb[0].mxu0
  %v2572 = vadd.f32 %v2475, %v2571
  %v2573 = vpop.f32.mrb[0].mxu0
  %2574 = vmatprep.mubr.bf16.mxu0 %v1777
  %2575 = vmatmul.mubr.bf16.gmra.mrb[0].mxu0 %v1776
  %v2576 = vpop.f32.mrb[0].mxu0
  %v2577 = vadd.f32 %v2480, %v2576
  %v2578 = vpop.f32.mrb[0].mxu0
  %v2579 = vpop.f32.mrb[0].mxu0
  %v2580 = vadd.f32 %v2483, %v2579
  %v2581 = vpop.f32.mrb[0].mxu0
  %2582 = vmatprep.mubr.bf16.mxu0 %v1785
  %2583 = vmatmul.mubr.bf16.gmra.mrb[0].mxu0 %v1784
  %v2584 = vpop.f32.mrb[0].mxu0
  %v2585 = vadd.f32 %v2488, %v2584
  %v2586 = vpop.f32.mrb[0].mxu0
  %v2587 = vpop.f32.mrb[0].mxu0
  %v2588 = vadd.f32 %v2491, %v2587
  %v2589 = vpop.f32.mrb[0].mxu0
  %2590 = vmatprep.mubr.bf16.mxu0 %v1793
  %2591 = vmatmul.mubr.bf16.gmra.mrb[0].mxu0 %v1792
  %v2592 = vpop.f32.mrb[0].mxu0
  %v2593 = vadd.f32 %v2496, %v2592
  %v2594 = vpop.f32.mrb[0].mxu0
  %v2595 = vpop.f32.mrb[0].mxu0
  %v2596 = vadd.f32 %v2499, %v2595
  %v2597 = vpop.f32.mrb[0].mxu0
  %2598 = vdwg.mxu0
  %2599 = vmatprep.subr.bf16.mxu0 0
  %2600 = vmatpush1.bf16.msra.mxu0 %v2228
  %2601 = vmatprep.subr.bf16.mxu0 0
  %2602 = vmatpush1.bf16.msra.mxu0 %v2229
  %2603 = vmatprep.subr.bf16.mxu0 0
  %2604 = vmatpush1.bf16.msra.mxu0 %v2230
  %2605 = vmatprep.subr.bf16.mxu0 0
  %2606 = vmatpush1.bf16.msra.mxu0 %v2231
  %2607 = vmatprep.subr.bf16.mxu0 0
  %2608 = vmatpush1.bf16.msra.mxu0 %v2232
  %2609 = vmatprep.subr.bf16.mxu0 0
  %2610 = vmatpush1.bf16.msra.mxu0 %v2233
  %2611 = vmatprep.subr.bf16.mxu0 0
  %2612 = vmatpush1.bf16.msra.mxu0 %v2234
  %2613 = vmatprep.subr.bf16.mxu0 0
  %2614 = vmatpush1.bf16.msra.mxu0 %v2235
  %2615 = vmatprep.subr.bf16.mxu0 0
  %2616 = vmatpush1.bf16.msra.mxu0 %v2236
  %2617 = vmatprep.subr.bf16.mxu0 0
  %2618 = vmatpush1.bf16.msra.mxu0 %v2237
  %2619 = vmatprep.subr.bf16.mxu0 0
  %2620 = vmatpush1.bf16.msra.mxu0 %v2238
  %2621 = vmatprep.subr.bf16.mxu0 0
  %2622 = vmatpush1.bf16.msra.mxu0 %v2239
  %2623 = vmatprep.subr.bf16.mxu0 0
  %2624 = vmatpush1.bf16.msra.mxu0 %v2240
  %2625 = vmatprep.subr.bf16.mxu0 0
  %2626 = vmatpush1.bf16.msra.mxu0 %v2241
  %2627 = vmatprep.subr.bf16.mxu0 0
  %2628 = vmatpush1.bf16.msra.mxu0 %v2242
  %2629 = vmatprep.subr.bf16.mxu0 0
  %2630 = vmatpush1.bf16.msra.mxu0 %v2243
  %2631 = vmatprep.mubr.bf16.mxu0 %v1739
  %2632 = vmatmul.mubr.bf16.gmra.mrb[0].mxu0 %v1738
  %v2633 = vpop.f32.mrb[0].mxu0
  %v2634 = vadd.f32 %v2537, %v2633
  %v2635 = vpop.f32.mrb[0].mxu0
  %v2636 = vpop.f32.mrb[0].mxu0
  %v2637 = vadd.f32 %v2540, %v2636
  %v2638 = vpop.f32.mrb[0].mxu0
  %2639 = vmatprep.mubr.bf16.mxu0 %v1747
  %2640 = vmatmul.mubr.bf16.gmra.mrb[0].mxu0 %v1746
  %v2641 = vpop.f32.mrb[0].mxu0
  %v2642 = vadd.f32 %v2545, %v2641
  %v2643 = vpop.f32.mrb[0].mxu0
  %v2644 = vpop.f32.mrb[0].mxu0
  %v2645 = vadd.f32 %v2548, %v2644
  %v2646 = vpop.f32.mrb[0].mxu0
  %2647 = vmatprep.mubr.bf16.mxu0 %v1755
  %2648 = vmatmul.mubr.bf16.gmra.mrb[0].mxu0 %v1754
  %v2649 = vpop.f32.mrb[0].mxu0
  %v2650 = vadd.f32 %v2553, %v2649
  %v2651 = vpop.f32.mrb[0].mxu0
  %v2652 = vpop.f32.mrb[0].mxu0
  %v2653 = vadd.f32 %v2556, %v2652
  %v2654 = vpop.f32.mrb[0].mxu0
  %2655 = vmatprep.mubr.bf16.mxu0 %v1763
  %2656 = vmatmul.mubr.bf16.gmra.mrb[0].mxu0 %v1762
  %v2657 = vpop.f32.mrb[0].mxu0
  %v2658 = vadd.f32 %v2561, %v2657
  %v2659 = vpop.f32.mrb[0].mxu0
  %v2660 = vpop.f32.mrb[0].mxu0
  %v2661 = vadd.f32 %v2564, %v2660
  %v2662 = vpop.f32.mrb[0].mxu0
  %2663 = vmatprep.mubr.bf16.mxu0 %v1771
  %2664 = vmatmul.mubr.bf16.gmra.mrb[0].mxu0 %v1770
  %v2665 = vpop.f32.mrb[0].mxu0
  %v2666 = vadd.f32 %v2569, %v2665
  %v2667 = vpop.f32.mrb[0].mxu0
  %v2668 = vpop.f32.mrb[0].mxu0
  %v2669 = vadd.f32 %v2572, %v2668
  %v2670 = vpop.f32.mrb[0].mxu0
  %2671 = vmatprep.mubr.bf16.mxu0 %v1779
  %2672 = vmatmul.mubr.bf16.gmra.mrb[0].mxu0 %v1778
  %v2673 = vpop.f32.mrb[0].mxu0
  %v2674 = vadd.f32 %v2577, %v2673
  %v2675 = vpop.f32.mrb[0].mxu0
  %v2676 = vpop.f32.mrb[0].mxu0
  %v2677 = vadd.f32 %v2580, %v2676
  %v2678 = vpop.f32.mrb[0].mxu0
  %2679 = vmatprep.mubr.bf16.mxu0 %v1787
  %2680 = vmatmul.mubr.bf16.gmra.mrb[0].mxu0 %v1786
  %v2681 = vpop.f32.mrb[0].mxu0
  %v2682 = vadd.f32 %v2585, %v2681
  %v2683 = vpop.f32.mrb[0].mxu0
  %v2684 = vpop.f32.mrb[0].mxu0
  %v2685 = vadd.f32 %v2588, %v2684
  %v2686 = vpop.f32.mrb[0].mxu0
  %2687 = vmatprep.mubr.bf16.mxu0 %v1795
  %2688 = vmatmul.mubr.bf16.gmra.mrb[0].mxu0 %v1794
  %v2689 = vpop.f32.mrb[0].mxu0
  %v2690 = vadd.f32 %v2593, %v2689
  %v2691 = vpop.f32.mrb[0].mxu0
  %v2692 = vpop.f32.mrb[0].mxu0
  %v2693 = vadd.f32 %v2596, %v2692
  %v2694 = vpop.f32.mrb[0].mxu0
  %2695 = vdwg.mxu0
  %v2696 = vld [vmem:[%s7] sm:$0xff]
  %v2697 = vld [vmem:[%s7 + $0x8] sm:$0xff]
  %v2698 = vld [vmem:[%s7 + $0x10] sm:$0xff]
  %v2699 = vld [vmem:[%s7 + $0x18] sm:$0xff]
  %v2700 = vld [vmem:[%s7 + $0x20] sm:$0xff]
  %v2701 = vld [vmem:[%s7 + $0x28] sm:$0xff]
  %v2702 = vld [vmem:[%s7 + $0x30] sm:$0xff]
  %v2703 = vld [vmem:[%s7 + $0x38] sm:$0xff]
  %v2704 = vld [vmem:[%s7 + $0x40] sm:$0xff]
  %v2705 = vld [vmem:[%s7 + $0x48] sm:$0xff]
  %v2706 = vld [vmem:[%s7 + $0x50] sm:$0xff]
  %v2707 = vld [vmem:[%s7 + $0x58] sm:$0xff]
  %v2708 = vld [vmem:[%s7 + $0x60] sm:$0xff]
  %v2709 = vld [vmem:[%s7 + $0x68] sm:$0xff]
  %v2710 = vld [vmem:[%s7 + $0x70] sm:$0xff]
  %v2711 = vld [vmem:[%s7 + $0x78] sm:$0xff]
  %2713 = vset.pattern.permute.xlu0 0
  %2714 = vperm.xlu0 %2713, %v2696
  %v2715 = vpop.permute.xlu0 %2714
  %2718 = vset.pattern.permute.xlu0 0
  %2719 = vperm.xlu0 %2718, %v2697
  %v2720 = vpop.permute.xlu0 %2719
  %2723 = vset.pattern.permute.xlu0 0
  %2724 = vperm.xlu0 %2723, %v2698
  %v2725 = vpop.permute.xlu0 %2724
  %2728 = vset.pattern.permute.xlu0 0
  %2729 = vperm.xlu0 %2728, %v2699
  %v2730 = vpop.permute.xlu0 %2729
  %2733 = vset.pattern.permute.xlu0 0
  %2734 = vperm.xlu0 %2733, %v2700
  %v2735 = vpop.permute.xlu0 %2734
  %2738 = vset.pattern.permute.xlu0 0
  %2739 = vperm.xlu0 %2738, %v2701
  %v2740 = vpop.permute.xlu0 %2739
  %2743 = vset.pattern.permute.xlu0 0
  %2744 = vperm.xlu0 %2743, %v2702
  %v2745 = vpop.permute.xlu0 %2744
  %2748 = vset.pattern.permute.xlu0 0
  %2749 = vperm.xlu0 %2748, %v2703
  %v2750 = vpop.permute.xlu0 %2749
  %2753 = vset.pattern.permute.xlu0 0
  %2754 = vperm.xlu0 %2753, %v2704
  %v2755 = vpop.permute.xlu0 %2754
  %2758 = vset.pattern.permute.xlu0 0
  %2759 = vperm.xlu0 %2758, %v2705
  %v2760 = vpop.permute.xlu0 %2759
  %2763 = vset.pattern.permute.xlu0 0
  %2764 = vperm.xlu0 %2763, %v2706
  %v2765 = vpop.permute.xlu0 %2764
  %2768 = vset.pattern.permute.xlu0 0
  %2769 = vperm.xlu0 %2768, %v2707
  %v2770 = vpop.permute.xlu0 %2769
  %2773 = vset.pattern.permute.xlu0 0
  %2774 = vperm.xlu0 %2773, %v2708
  %v2775 = vpop.permute.xlu0 %2774
  %2778 = vset.pattern.permute.xlu0 0
  %2779 = vperm.xlu0 %2778, %v2709
  %v2780 = vpop.permute.xlu0 %2779
  %2783 = vset.pattern.permute.xlu0 0
  %2784 = vperm.xlu0 %2783, %v2710
  %v2785 = vpop.permute.xlu0 %2784
  %2788 = vset.pattern.permute.xlu0 0
  %2789 = vperm.xlu0 %2788, %v2711
  %v2790 = vpop.permute.xlu0 %2789
  %v2792 = vmul.f32 %v2634, %v2715
  %v2793 = vmul.f32 %v2637, %v2720
  %v2794 = vmul.f32 %v2642, %v2725
  %v2795 = vmul.f32 %v2645, %v2730
  %v2796 = vmul.f32 %v2650, %v2735
  %v2797 = vmul.f32 %v2653, %v2740
  %v2798 = vmul.f32 %v2658, %v2745
  %v2799 = vmul.f32 %v2661, %v2750
  %v2800 = vmul.f32 %v2666, %v2755
  %v2801 = vmul.f32 %v2669, %v2760
  %v2802 = vmul.f32 %v2674, %v2765
  %v2803 = vmul.f32 %v2677, %v2770
  %v2804 = vmul.f32 %v2682, %v2775
  %v2805 = vmul.f32 %v2685, %v2780
  %v2806 = vmul.f32 %v2690, %v2785
  %v2807 = vmul.f32 %v2693, %v2790
  %v2808 = vadd.f32 %v2792, %v2793
  %v2809 = vadd.f32 %v2808, %v2794
  %v2810 = vadd.f32 %v2809, %v2795
  %v2811 = vadd.f32 %v2810, %v2796
  %v2812 = vadd.f32 %v2811, %v2797
  %v2813 = vadd.f32 %v2812, %v2798
  %v2814 = vadd.f32 %v2813, %v2799
  %v2815 = vadd.f32 %v2814, %v2800
  %v2816 = vadd.f32 %v2815, %v2801
  %v2817 = vadd.f32 %v2816, %v2802
  %v2818 = vadd.f32 %v2817, %v2803
  %v2819 = vadd.f32 %v2818, %v2804
  %v2820 = vadd.f32 %v2819, %v2805
  %v2821 = vadd.f32 %v2820, %v2806
  %v2822 = vadd.f32 %v2821, %v2807
  %v2823 = vrot.slane %v2822, 4
  %v2824 = vadd.f32 %v2822, %v2823
  %v2825 = vrot.slane %v2824, 2
  %v2826 = vadd.f32 %v2824, %v2825
  %v2827 = vrot.slane %v2826, 1
  %v2828 = vadd.f32 %v2826, %v2827
  %v2829 = vmul.f32 %v2828, 0.010204081
  %v2830 = vsub.f32 %v2634, %v2829
  %v2831 = vsub.f32 %v2637, %v2829
  %v2832 = vsub.f32 %v2642, %v2829
  %v2833 = vsub.f32 %v2645, %v2829
  %v2834 = vsub.f32 %v2650, %v2829
  %v2835 = vsub.f32 %v2653, %v2829
  %v2836 = vsub.f32 %v2658, %v2829
  %v2837 = vsub.f32 %v2661, %v2829
  %v2838 = vsub.f32 %v2666, %v2829
  %v2839 = vsub.f32 %v2669, %v2829
  %v2840 = vsub.f32 %v2674, %v2829
  %v2841 = vsub.f32 %v2677, %v2829
  %v2842 = vsub.f32 %v2682, %v2829
  %v2843 = vsub.f32 %v2685, %v2829
  %v2844 = vsub.f32 %v2690, %v2829
  %v2845 = vsub.f32 %v2693, %v2829
  %v2846 = vmul.f32 %v2830, %v2830
  %v2847 = vmul.f32 %v2831, %v2831
  %v2848 = vmul.f32 %v2832, %v2832
  %v2849 = vmul.f32 %v2833, %v2833
  %v2850 = vmul.f32 %v2834, %v2834
  %v2851 = vmul.f32 %v2835, %v2835
  %v2852 = vmul.f32 %v2836, %v2836
  %v2853 = vmul.f32 %v2837, %v2837
  %v2854 = vmul.f32 %v2838, %v2838
  %v2855 = vmul.f32 %v2839, %v2839
  %v2856 = vmul.f32 %v2840, %v2840
  %v2857 = vmul.f32 %v2841, %v2841
  %v2858 = vmul.f32 %v2842, %v2842
  %v2859 = vmul.f32 %v2843, %v2843
  %v2860 = vmul.f32 %v2844, %v2844
  %v2861 = vmul.f32 %v2845, %v2845
  %v2862 = vmul.f32 %v2846, %v2715
  %v2863 = vmul.f32 %v2847, %v2720
  %v2864 = vmul.f32 %v2848, %v2725
  %v2865 = vmul.f32 %v2849, %v2730
  %v2866 = vmul.f32 %v2850, %v2735
  %v2867 = vmul.f32 %v2851, %v2740
  %v2868 = vmul.f32 %v2852, %v2745
  %v2869 = vmul.f32 %v2853, %v2750
  %v2870 = vmul.f32 %v2854, %v2755
  %v2871 = vmul.f32 %v2855, %v2760
  %v2872 = vmul.f32 %v2856, %v2765
  %v2873 = vmul.f32 %v2857, %v2770
  %v2874 = vmul.f32 %v2858, %v2775
  %v2875 = vmul.f32 %v2859, %v2780
  %v2876 = vmul.f32 %v2860, %v2785
  %v2877 = vmul.f32 %v2861, %v2790
  %v2878 = vadd.f32 %v2862, %v2863
  %v2879 = vadd.f32 %v2878, %v2864
  %v2880 = vadd.f32 %v2879, %v2865
  %v2881 = vadd.f32 %v2880, %v2866
  %v2882 = vadd.f32 %v2881, %v2867
  %v2883 = vadd.f32 %v2882, %v2868
  %v2884 = vadd.f32 %v2883, %v2869
  %v2885 = vadd.f32 %v2884, %v2870
  %v2886 = vadd.f32 %v2885, %v2871
  %v2887 = vadd.f32 %v2886, %v2872
  %v2888 = vadd.f32 %v2887, %v2873
  %v2889 = vadd.f32 %v2888, %v2874
  %v2890 = vadd.f32 %v2889, %v2875
  %v2891 = vadd.f32 %v2890, %v2876
  %v2892 = vadd.f32 %v2891, %v2877
  %v2893 = vrot.slane %v2892, 4
  %v2894 = vadd.f32 %v2892, %v2893
  %v2895 = vrot.slane %v2894, 2
  %v2896 = vadd.f32 %v2894, %v2895
  %v2897 = vrot.slane %v2896, 1
  %v2898 = vadd.f32 %v2896, %v2897
  %v2899 = vmul.f32 %v2898, 0.010204081
  %v2900 = vld [vmem:[%s3] sm:$0x1]
  %v2901 = vadd.f32 %v2899, 1e-05
  %v2902 = vrsqrt.pop %v2901
  %v2903 = vmul.f32 %v2900, %v2902
  %v2905 = vlaneseq
  %v2906 = vshrl.u32 %v2905, 7
  %v2907 = vsub.s32 0, %v2906
  %v2908 = vrot.slane %v2903, %v2907
  %v2910 = vmul.f32 %v2830, %v2908
  %v2911 = vmul.f32 %v2831, %v2908
  %v2912 = vmul.f32 %v2832, %v2908
  %v2913 = vmul.f32 %v2833, %v2908
  %v2914 = vmul.f32 %v2834, %v2908
  %v2915 = vmul.f32 %v2835, %v2908
  %v2916 = vmul.f32 %v2836, %v2908
  %v2917 = vmul.f32 %v2837, %v2908
  %v2918 = vmul.f32 %v2838, %v2908
  %v2919 = vmul.f32 %v2839, %v2908
  %v2920 = vmul.f32 %v2840, %v2908
  %v2921 = vmul.f32 %v2841, %v2908
  %v2922 = vmul.f32 %v2842, %v2908
  %v2923 = vmul.f32 %v2843, %v2908
  %v2924 = vmul.f32 %v2844, %v2908
  %v2925 = vmul.f32 %v2845, %v2908
  %v2926 = vld [vmem:[%s4] sm:$0x1]
  %v2928 = vlaneseq
  %v2929 = vshrl.u32 %v2928, 7
  %v2930 = vsub.s32 0, %v2929
  %v2931 = vrot.slane %v2926, %v2930
  %v2933 = vadd.f32 %v2910, %v2931
  %v2934 = vadd.f32 %v2911, %v2931
  %v2935 = vadd.f32 %v2912, %v2931
  %v2936 = vadd.f32 %v2913, %v2931
  %v2937 = vadd.f32 %v2914, %v2931
  %v2938 = vadd.f32 %v2915, %v2931
  %v2939 = vadd.f32 %v2916, %v2931
  %v2940 = vadd.f32 %v2917, %v2931
  %v2941 = vadd.f32 %v2918, %v2931
  %v2942 = vadd.f32 %v2919, %v2931
  %v2943 = vadd.f32 %v2920, %v2931
  %v2944 = vadd.f32 %v2921, %v2931
  %v2945 = vadd.f32 %v2922, %v2931
  %v2946 = vadd.f32 %v2923, %v2931
  %v2947 = vadd.f32 %v2924, %v2931
  %v2948 = vadd.f32 %v2925, %v2931
  %vm2949 = vcmp.gt.f32.partialorder %v2933, 0.0
  %vm2950 = vcmp.gt.f32.partialorder %v2934, 0.0
  %vm2951 = vcmp.gt.f32.partialorder %v2935, 0.0
  %vm2952 = vcmp.gt.f32.partialorder %v2936, 0.0
  %vm2953 = vcmp.gt.f32.partialorder %v2937, 0.0
  %vm2954 = vcmp.gt.f32.partialorder %v2938, 0.0
  %vm2955 = vcmp.gt.f32.partialorder %v2939, 0.0
  %vm2956 = vcmp.gt.f32.partialorder %v2940, 0.0
  %vm2957 = vcmp.gt.f32.partialorder %v2941, 0.0
  %vm2958 = vcmp.gt.f32.partialorder %v2942, 0.0
  %vm2959 = vcmp.gt.f32.partialorder %v2943, 0.0
  %vm2960 = vcmp.gt.f32.partialorder %v2944, 0.0
  %vm2961 = vcmp.gt.f32.partialorder %v2945, 0.0
  %vm2962 = vcmp.gt.f32.partialorder %v2946, 0.0
  %vm2963 = vcmp.gt.f32.partialorder %v2947, 0.0
  %vm2964 = vcmp.gt.f32.partialorder %v2948, 0.0
  %v2965 = vmul.f32 %v2933, 0.2
  %v2966 = vmul.f32 %v2934, 0.2
  %v2967 = vmul.f32 %v2935, 0.2
  %v2968 = vmul.f32 %v2936, 0.2
  %v2969 = vmul.f32 %v2937, 0.2
  %v2970 = vmul.f32 %v2938, 0.2
  %v2971 = vmul.f32 %v2939, 0.2
  %v2972 = vmul.f32 %v2940, 0.2
  %v2973 = vmul.f32 %v2941, 0.2
  %v2974 = vmul.f32 %v2942, 0.2
  %v2975 = vmul.f32 %v2943, 0.2
  %v2976 = vmul.f32 %v2944, 0.2
  %v2977 = vmul.f32 %v2945, 0.2
  %v2978 = vmul.f32 %v2946, 0.2
  %v2979 = vmul.f32 %v2947, 0.2
  %v2980 = vmul.f32 %v2948, 0.2
  %v2981 = vsel %vm2949, %v2933, %v2965
  %v2982 = vsel %vm2950, %v2934, %v2966
  %v2983 = vsel %vm2951, %v2935, %v2967
  %v2984 = vsel %vm2952, %v2936, %v2968
  %v2985 = vsel %vm2953, %v2937, %v2969
  %v2986 = vsel %vm2954, %v2938, %v2970
  %v2987 = vsel %vm2955, %v2939, %v2971
  %v2988 = vsel %vm2956, %v2940, %v2972
  %v2989 = vsel %vm2957, %v2941, %v2973
  %v2990 = vsel %vm2958, %v2942, %v2974
  %v2991 = vsel %vm2959, %v2943, %v2975
  %v2992 = vsel %vm2960, %v2944, %v2976
  %v2993 = vsel %vm2961, %v2945, %v2977
  %v2994 = vsel %vm2962, %v2946, %v2978
  %v2995 = vsel %vm2963, %v2947, %v2979
  %v2996 = vsel %vm2964, %v2948, %v2980
  %v2997 = vld [vmem:[%s5] sm:$0xff]
  %v2998 = vld [vmem:[%s5 + $0x8] sm:$0xff]
  %v2999 = vld [vmem:[%s5 + $0x10] sm:$0xff]
  %v3000 = vld [vmem:[%s5 + $0x18] sm:$0xff]
  %v3001 = vld [vmem:[%s5 + $0x20] sm:$0xff]
  %v3002 = vld [vmem:[%s5 + $0x28] sm:$0xff]
  %v3003 = vld [vmem:[%s5 + $0x30] sm:$0xff]
  %v3004 = vld [vmem:[%s5 + $0x38] sm:$0xff]
  %v3005 = vmul.f32 %v2981, %v2997
  %v3006 = vmul.f32 %v2982, %v2998
  %v3007 = vmul.f32 %v2983, %v2999
  %v3008 = vmul.f32 %v2984, %v3000
  %v3009 = vmul.f32 %v2985, %v3001
  %v3010 = vmul.f32 %v2986, %v3002
  %v3011 = vmul.f32 %v2987, %v3003
  %v3012 = vmul.f32 %v2988, %v3004
  %v3013 = vadd.f32 %v3005, %v3006
  %v3014 = vadd.f32 %v3013, %v3007
  %v3015 = vadd.f32 %v3014, %v3008
  %v3016 = vadd.f32 %v3015, %v3009
  %v3017 = vadd.f32 %v3016, %v3010
  %v3018 = vadd.f32 %v3017, %v3011
  %v3019 = vadd.f32 %v3018, %v3012
  %v3020 = vrot.slane %v3019, 4
  %v3021 = vadd.f32 %v3019, %v3020
  %v3022 = vrot.slane %v3021, 2
  %v3023 = vadd.f32 %v3021, %v3022
  %v3024 = vrot.slane %v3023, 1
  %v3025 = vadd.f32 %v3023, %v3024
  %v3026 = vmul.f32 %v2989, %v2997
  %v3027 = vmul.f32 %v2990, %v2998
  %v3028 = vmul.f32 %v2991, %v2999
  %v3029 = vmul.f32 %v2992, %v3000
  %v3030 = vmul.f32 %v2993, %v3001
  %v3031 = vmul.f32 %v2994, %v3002
  %v3032 = vmul.f32 %v2995, %v3003
  %v3033 = vmul.f32 %v2996, %v3004
  %v3034 = vadd.f32 %v3026, %v3027
  %v3035 = vadd.f32 %v3034, %v3028
  %v3036 = vadd.f32 %v3035, %v3029
  %v3037 = vadd.f32 %v3036, %v3030
  %v3038 = vadd.f32 %v3037, %v3031
  %v3039 = vadd.f32 %v3038, %v3032
  %v3040 = vadd.f32 %v3039, %v3033
  %v3041 = vrot.slane %v3040, 4
  %v3042 = vadd.f32 %v3040, %v3041
  %v3043 = vrot.slane %v3042, 2
  %v3044 = vadd.f32 %v3042, %v3043
  %v3045 = vrot.slane %v3044, 1
  %v3046 = vadd.f32 %v3044, %v3045
  %vm3047 = vcmask 1040384
  %v3048 = vsel %vm3047, %v3025, %v3046
  %vm3049 = vcmask 1041408
  %v3050 = vsel %vm3049, %v3048, 0.0
  %3051 = vadd.xlane.f32.xlu0 %v3050
  %v3052 = vpop.xlane.xlu0 %3051
  %v3053 = vld [vmem:[#allocation2] sm:$0x1]
  %v3055 = vlaneseq
  %v3056 = vshrl.u32 %v3055, 7
  %v3057 = vsub.s32 0, %v3056
  %v3058 = vrot.slane %v3053, %v3057
  %v3060 = vadd.f32 %v3052, %v3058
  %v3061 = vxor.u32 %v3060, 2147483648
  %v3062 = vmul.f32 %v3061, 1.442695
  %v3063 = vpow.pop %v3062
  %v3064 = vadd.f32 %v3063, 1.0
  %v3065 = vrcp.pop %v3064
  %v3066 = vmul.f32 1.0, %v3065
  %vm3067 = vcmask 1024
  %3068 = vst.msk [vmem:[%s8] sm:$0x3] %vm3067, %v3066
  // Predicated region
  $region34: #{discriminator_forward.1} parent=0 // pred_check
    _
  $region35: #{discriminator_forward.1} parent=0 // pred_check_branch
    %3070 = sbr.rel (0) target = $region37
  $region36: #{discriminator_forward.1} parent=0 // pred_region
    _
  $region37: #{discriminator_forward.1} parent=0 // pred_fallthru
    _
  // Predicated region
  $region38: #{discriminator_forward.1} parent=0 // pred_check
    _
  $region39: #{discriminator_forward.1} parent=0 // pred_check_branch
    %3072 = sbr.rel (0) target = $region41
  $region40: #{discriminator_forward.1} parent=0 // pred_region
    _
  $region41: #{discriminator_forward.1} parent=0 // pred_fallthru
    _

</llo_original>
